<compile_context>
chip_gen: v5e
topology: v5e:2x2
jax: 0.10.0
libtpu: 0.0.40
codegen_flags: <defaults>
</compile_context>

<pallas_src>
import jax
import jax.numpy as jnp
from jax.experimental import pallas as pl
from jax.experimental.pallas import tpu as pltpu

NEG_SLOPE = 0.01  # nn.LeakyReLU() default negative_slope


def _leaky(x):
    return jnp.where(x >= 0, x, NEG_SLOPE * x)


# ---------------------------------------------------------------------------
# Fused CAM2 kernel (Bt batch samples per grid step, lane-dense (Bt,H,W*C))
# ---------------------------------------------------------------------------
def _make_cam2_kernel(Bt, H, W, C):
    h4, w4 = H // 4, W // 4
    inv44 = 1.0 / float(h4 * w4)

    def kernel(x_ref, wfold_ref, wf2_ref, o_ref):
        x3 = x_ref[...].astype(jnp.float32)            # (Bt, H, W*C) lane-dense

        # ---- 4x4 equal-block avg/max pools -------------------------------
        # H reduction per 4-block: accumulate rows on full-width (W*C) vregs.
        hs, hm = [], []
        for i in range(4):
            row0 = x3[:, i * h4, :]                    # (Bt, W*C)
            s, m = row0, row0
            for r in range(1, h4):
                row = x3[:, i * h4 + r, :]
                s = s + row
                m = jnp.maximum(m, row)
            hs.append(s)
            hm.append(m)

        # W reduction inside the lane axis (C-wide channel chunks).
        avg4 = [[None] * 4 for _ in range(4)]
        max4 = [[None] * 4 for _ in range(4)]
        for i in range(4):
            for j in range(4):
                base = j * w4 * C
                s = hs[i][:, base:base + C]            # (Bt, C)
                m = hm[i][:, base:base + C]
                for k in range(1, w4):
                    lo = base + k * C
                    s = s + hs[i][:, lo:lo + C]
                    m = jnp.maximum(m, hm[i][:, lo:lo + C])
                avg4[i][j] = s * inv44
                max4[i][j] = m

        # ---- 2x2 and 1x1 pools derived hierarchically (equal blocks) -----
        avg2 = [[(avg4[2*i][2*j] + avg4[2*i][2*j+1]
                  + avg4[2*i+1][2*j] + avg4[2*i+1][2*j+1]) * 0.25
                 for j in range(2)] for i in range(2)]
        max2 = [[jnp.maximum(jnp.maximum(max4[2*i][2*j], max4[2*i][2*j+1]),
                             jnp.maximum(max4[2*i+1][2*j], max4[2*i+1][2*j+1]))
                 for j in range(2)] for i in range(2)]
        avg1 = (avg2[0][0] + avg2[0][1] + avg2[1][0] + avg2[1][1]) * 0.25
        max1 = jnp.maximum(jnp.maximum(max2[0][0], max2[0][1]),
                           jnp.maximum(max2[1][0], max2[1][1]))

        # ---- all pooled features, ordered to match W_fold rows -----------
        parts = [avg1, max1]
        for i in range(2):
            for j in range(2):
                parts.append(avg2[i][j])
                parts.append(max2[i][j])
        for i in range(4):
            for j in range(4):
                parts.append(avg4[i][j])
                parts.append(max4[i][j])
        v_all = jnp.concatenate(parts, axis=-1)        # (Bt, 42C)

        # ---- folded bottleneck: leaky(v_all @ W_fold) @ wf2 -> tanh ------
        h = jnp.dot(v_all, wfold_ref[...], preferred_element_type=jnp.float32)
        h = _leaky(h)                                                  # (Bt, R)
        g = jnp.tanh(jnp.dot(h, wf2_ref[...],
                             preferred_element_type=jnp.float32))      # (Bt, C)

        # ---- modulation epilogue on the lane-dense layout -----------------
        gate = jnp.concatenate([1.0 + g] * W, axis=-1)  # (Bt, W*C)
        o_ref[...] = (x3 * gate[:, None, :]).astype(o_ref.dtype)

    return kernel


# ---------------------------------------------------------------------------
# Wrapper
# ---------------------------------------------------------------------------
def _pick_block_batch(B, H, WC):
    """Largest Bt within a conservative VMEM budget; >=2 grid steps when B>=2
    so both v7x TensorCores get work; Bt must divide B."""
    budget = 8 * 1024 * 1024
    per_sample = H * WC * 4                      # f32 working copy of one sample
    bt = max(1, min(B, budget // (per_sample * 6)))
    if B >= 2:
        bt = min(bt, pl.cdiv(B, 2))
    while B % bt:
        bt -= 1
    return bt


def cam2_forward(x, fp):
    B, H, W, C = x.shape
    assert H % 4 == 0 and W % 4 == 0, \
        "adaptive pools reduce to equal blocks only when H, W % 4 == 0"
    WC = W * C
    R = fp['w_fold'].shape[-1]
    assert fp['w_fold'].shape == (42 * C, R) and fp['wf2'].shape == (R, C)

    Bt = _pick_block_batch(B, H, WC)
    kernel = _make_cam2_kernel(Bt, H, W, C)
    x2d = x.reshape(B, H, WC)                    # lane-dense view (free reshape)

    out2d = pl.pallas_call(
        kernel,
        out_shape=jax.ShapeDtypeStruct((B, H, WC), x.dtype),
        grid=(B // Bt,),
        in_specs=[
            pl.BlockSpec((Bt, H, WC), lambda b: (b, 0, 0)),
            pl.BlockSpec((42 * C, R), lambda b: (0, 0)),
            pl.BlockSpec((R, C), lambda b: (0, 0)),
        ],
        out_specs=pl.BlockSpec((Bt, H, WC), lambda b: (b, 0, 0)),
        compiler_params=pltpu.CompilerParams(
            dimension_semantics=("parallel",),
            vmem_limit_bytes=32 * 1024 * 1024,
        ),
    )(x2d, fp['w_fold'], fp['wf2'])
    return out2d.reshape(B, H, W, C)


# ---------------------------------------------------------------------------
# Parameters (shapes from CAM2.__init__, all convs bias=False) + offline fold
# ---------------------------------------------------------------------------
def init_params(key, C, ratio=16):
    R = (6 * C) // ratio
    ks = jax.random.split(key, 5)

    def w(k, shape, fan_in):
        return jax.random.normal(k, shape, jnp.float32) * (1.0 / float(fan_in) ** 0.5)

    return {
        'w1':  w(ks[0], (2 * C, 2 * C), 2 * C),           # conv1  (1x1)
        'w2':  w(ks[1], (2 * 2 * 2 * C, 2 * C), 8 * C),   # conv2  (k=2,s=2), HWIO-flat
        'w4':  w(ks[2], (4 * 4 * 2 * C, 2 * C), 32 * C),  # conv4  (k=4,s=4), HWIO-flat
        'wf1': w(ks[3], (6 * C, R), 6 * C),               # conv_final1
        'wf2': w(ks[4], (R, C), R),                       # conv_final2
    }


def fold_params(p):
    """Exact fold: no nonlinearity between the scale convs and conv_final1."""
    c2 = p['w1'].shape[0]          # 2C
    w_fold = jnp.concatenate([
        p['w1'] @ p['wf1'][0 * c2:1 * c2],
        p['w2'] @ p['wf1'][1 * c2:2 * c2],
        p['w4'] @ p['wf1'][2 * c2:3 * c2],
    ], axis=0).astype(jnp.float32)                         # (42C, R)
    return {'w_fold': w_fold, 'wf2': p['wf2'].astype(jnp.float32)}


# ---------------------------------------------------------------------------
# Pure-JAX reference (unfused weights; correctness check only)
# ---------------------------------------------------------------------------
def ref_cam2(x, p):
    B, H, W, C = x.shape

    def pools(k):
        xr = x.reshape(B, k, H // k, k, W // k, C)
        return xr.mean(axis=(2, 4)), xr.max(axis=(2, 4))   # (B, k, k, C) each

    a1, m1 = pools(1)
    a2, m2 = pools(2)
    a4, m4 = pools(4)
    v1 = jnp.concatenate([a1, m1], axis=-1).reshape(B, 2 * C)
    v2 = jnp.concatenate([a2, m2], axis=-1).reshape(B, 8 * C)
    v4 = jnp.concatenate([a4, m4], axis=-1).reshape(B, 32 * C)
    y = jnp.concatenate([v1 @ p['w1'], v2 @ p['w2'], v4 @ p['w4']], axis=-1)
    h = _leaky(y @ p['wf1'])
    g = jnp.tanh(h @ p['wf2'])                              # (B, C)
    return x * (1.0 + g[:, None, None, :])


# ---------------------------------------------------------------------------
if __name__ == "__main__":
    B, H, W, C = 2, 16, 16, 32      # NHWC; 6C=192, ratio=16 -> hidden R=12

    key = jax.random.PRNGKey(0)
    kx, kp = jax.random.split(key)
    x = jax.random.normal(kx, (B, H, W, C), jnp.float32)
    raw = init_params(kp, C)
    folded = fold_params(raw)

    out = cam2_forward(x, folded)
    out = jax.block_until_ready(out)

    ref = ref_cam2(x, raw)
    err = float(jnp.max(jnp.abs(out - ref)))
    assert out.shape == (B, H, W, C) and out.dtype == x.dtype
    assert err < 1e-3, f"max abs err {err}"
    print("KERNEL_OK")
</pallas_src>

<mosaic_0001>
module attributes {stable_mosaic.version = 11 : i64} {
  func.func @kernel(%arg0: i32, %arg1: memref<1x16x512xf32, #tpu.memory_space<vmem>>, %arg2: memref<1344x12xf32, #tpu.memory_space<vmem>>, %arg3: memref<12x32xf32, #tpu.memory_space<vmem>>, %arg4: memref<1x16x512xf32, #tpu.memory_space<vmem>>) attributes {dimension_semantics = [#tpu.dimension_semantics<parallel>], iteration_bounds = array<i64: 2>, scalar_prefetch = 0 : i64, scratch_operands = 0 : i64, tpu.core_type = #tpu.core_type<tc>, window_params = [{transform_indices = @transform_0, window_bounds = array<i64: 1, 16, 512>}, {pipeline_mode = #tpu.pipeline_mode<synchronous>, transform_indices = @transform_1, window_bounds = array<i64: 1344, 12>}, {pipeline_mode = #tpu.pipeline_mode<synchronous>, transform_indices = @transform_2, window_bounds = array<i64: 12, 32>}, {transform_indices = @transform_3, window_bounds = array<i64: 1, 16, 512>}]} {
    %c0 = arith.constant 0 : index
    %c0_0 = arith.constant 0 : index
    %c0_1 = arith.constant 0 : index
    %0 = vector.load %arg1[%c0, %c0_0, %c0_1] : memref<1x16x512xf32, #tpu.memory_space<vmem>>, vector<1x16x512xf32>
    %1 = vector.extract_strided_slice %0 {offsets = [0, 0, 0], sizes = [1, 1, 512], strides = [1, 1, 1]} : vector<1x16x512xf32> to vector<1x1x512xf32>
    %2 = vector.shape_cast %1 : vector<1x1x512xf32> to vector<1x512xf32>
    %3 = vector.extract_strided_slice %0 {offsets = [0, 1, 0], sizes = [1, 1, 512], strides = [1, 1, 1]} : vector<1x16x512xf32> to vector<1x1x512xf32>
    %4 = vector.shape_cast %3 : vector<1x1x512xf32> to vector<1x512xf32>
    %5 = arith.addf %2, %4 : vector<1x512xf32>
    %6 = arith.maximumf %2, %4 : vector<1x512xf32>
    %7 = vector.extract_strided_slice %0 {offsets = [0, 2, 0], sizes = [1, 1, 512], strides = [1, 1, 1]} : vector<1x16x512xf32> to vector<1x1x512xf32>
    %8 = vector.shape_cast %7 : vector<1x1x512xf32> to vector<1x512xf32>
    %9 = arith.addf %5, %8 : vector<1x512xf32>
    %10 = arith.maximumf %6, %8 : vector<1x512xf32>
    %11 = vector.extract_strided_slice %0 {offsets = [0, 3, 0], sizes = [1, 1, 512], strides = [1, 1, 1]} : vector<1x16x512xf32> to vector<1x1x512xf32>
    %12 = vector.shape_cast %11 : vector<1x1x512xf32> to vector<1x512xf32>
    %13 = arith.addf %9, %12 : vector<1x512xf32>
    %14 = arith.maximumf %10, %12 : vector<1x512xf32>
    %15 = vector.extract_strided_slice %0 {offsets = [0, 4, 0], sizes = [1, 1, 512], strides = [1, 1, 1]} : vector<1x16x512xf32> to vector<1x1x512xf32>
    %16 = vector.shape_cast %15 : vector<1x1x512xf32> to vector<1x512xf32>
    %17 = vector.extract_strided_slice %0 {offsets = [0, 5, 0], sizes = [1, 1, 512], strides = [1, 1, 1]} : vector<1x16x512xf32> to vector<1x1x512xf32>
    %18 = vector.shape_cast %17 : vector<1x1x512xf32> to vector<1x512xf32>
    %19 = arith.addf %16, %18 : vector<1x512xf32>
    %20 = arith.maximumf %16, %18 : vector<1x512xf32>
    %21 = vector.extract_strided_slice %0 {offsets = [0, 6, 0], sizes = [1, 1, 512], strides = [1, 1, 1]} : vector<1x16x512xf32> to vector<1x1x512xf32>
    %22 = vector.shape_cast %21 : vector<1x1x512xf32> to vector<1x512xf32>
    %23 = arith.addf %19, %22 : vector<1x512xf32>
    %24 = arith.maximumf %20, %22 : vector<1x512xf32>
    %25 = vector.extract_strided_slice %0 {offsets = [0, 7, 0], sizes = [1, 1, 512], strides = [1, 1, 1]} : vector<1x16x512xf32> to vector<1x1x512xf32>
    %26 = vector.shape_cast %25 : vector<1x1x512xf32> to vector<1x512xf32>
    %27 = arith.addf %23, %26 : vector<1x512xf32>
    %28 = arith.maximumf %24, %26 : vector<1x512xf32>
    %29 = vector.extract_strided_slice %0 {offsets = [0, 8, 0], sizes = [1, 1, 512], strides = [1, 1, 1]} : vector<1x16x512xf32> to vector<1x1x512xf32>
    %30 = vector.shape_cast %29 : vector<1x1x512xf32> to vector<1x512xf32>
    %31 = vector.extract_strided_slice %0 {offsets = [0, 9, 0], sizes = [1, 1, 512], strides = [1, 1, 1]} : vector<1x16x512xf32> to vector<1x1x512xf32>
    %32 = vector.shape_cast %31 : vector<1x1x512xf32> to vector<1x512xf32>
    %33 = arith.addf %30, %32 : vector<1x512xf32>
    %34 = arith.maximumf %30, %32 : vector<1x512xf32>
    %35 = vector.extract_strided_slice %0 {offsets = [0, 10, 0], sizes = [1, 1, 512], strides = [1, 1, 1]} : vector<1x16x512xf32> to vector<1x1x512xf32>
    %36 = vector.shape_cast %35 : vector<1x1x512xf32> to vector<1x512xf32>
    %37 = arith.addf %33, %36 : vector<1x512xf32>
    %38 = arith.maximumf %34, %36 : vector<1x512xf32>
    %39 = vector.extract_strided_slice %0 {offsets = [0, 11, 0], sizes = [1, 1, 512], strides = [1, 1, 1]} : vector<1x16x512xf32> to vector<1x1x512xf32>
    %40 = vector.shape_cast %39 : vector<1x1x512xf32> to vector<1x512xf32>
    %41 = arith.addf %37, %40 : vector<1x512xf32>
    %42 = arith.maximumf %38, %40 : vector<1x512xf32>
    %43 = vector.extract_strided_slice %0 {offsets = [0, 12, 0], sizes = [1, 1, 512], strides = [1, 1, 1]} : vector<1x16x512xf32> to vector<1x1x512xf32>
    %44 = vector.shape_cast %43 : vector<1x1x512xf32> to vector<1x512xf32>
    %45 = vector.extract_strided_slice %0 {offsets = [0, 13, 0], sizes = [1, 1, 512], strides = [1, 1, 1]} : vector<1x16x512xf32> to vector<1x1x512xf32>
    %46 = vector.shape_cast %45 : vector<1x1x512xf32> to vector<1x512xf32>
    %47 = arith.addf %44, %46 : vector<1x512xf32>
    %48 = arith.maximumf %44, %46 : vector<1x512xf32>
    %49 = vector.extract_strided_slice %0 {offsets = [0, 14, 0], sizes = [1, 1, 512], strides = [1, 1, 1]} : vector<1x16x512xf32> to vector<1x1x512xf32>
    %50 = vector.shape_cast %49 : vector<1x1x512xf32> to vector<1x512xf32>
    %51 = arith.addf %47, %50 : vector<1x512xf32>
    %52 = arith.maximumf %48, %50 : vector<1x512xf32>
    %53 = vector.extract_strided_slice %0 {offsets = [0, 15, 0], sizes = [1, 1, 512], strides = [1, 1, 1]} : vector<1x16x512xf32> to vector<1x1x512xf32>
    %54 = vector.shape_cast %53 : vector<1x1x512xf32> to vector<1x512xf32>
    %55 = arith.addf %51, %54 : vector<1x512xf32>
    %56 = arith.maximumf %52, %54 : vector<1x512xf32>
    %57 = vector.extract_strided_slice %13 {offsets = [0, 0], sizes = [1, 32], strides = [1, 1]} : vector<1x512xf32> to vector<1x32xf32>
    %58 = vector.extract_strided_slice %14 {offsets = [0, 0], sizes = [1, 32], strides = [1, 1]} : vector<1x512xf32> to vector<1x32xf32>
    %59 = vector.extract_strided_slice %13 {offsets = [0, 32], sizes = [1, 32], strides = [1, 1]} : vector<1x512xf32> to vector<1x32xf32>
    %60 = arith.addf %57, %59 : vector<1x32xf32>
    %61 = vector.extract_strided_slice %14 {offsets = [0, 32], sizes = [1, 32], strides = [1, 1]} : vector<1x512xf32> to vector<1x32xf32>
    %62 = arith.maximumf %58, %61 : vector<1x32xf32>
    %63 = vector.extract_strided_slice %13 {offsets = [0, 64], sizes = [1, 32], strides = [1, 1]} : vector<1x512xf32> to vector<1x32xf32>
    %64 = arith.addf %60, %63 : vector<1x32xf32>
    %65 = vector.extract_strided_slice %14 {offsets = [0, 64], sizes = [1, 32], strides = [1, 1]} : vector<1x512xf32> to vector<1x32xf32>
    %66 = arith.maximumf %62, %65 : vector<1x32xf32>
    %67 = vector.extract_strided_slice %13 {offsets = [0, 96], sizes = [1, 32], strides = [1, 1]} : vector<1x512xf32> to vector<1x32xf32>
    %68 = arith.addf %64, %67 : vector<1x32xf32>
    %69 = vector.extract_strided_slice %14 {offsets = [0, 96], sizes = [1, 32], strides = [1, 1]} : vector<1x512xf32> to vector<1x32xf32>
    %70 = arith.maximumf %66, %69 : vector<1x32xf32>
    %cst = arith.constant 6.250000e-02 : f32
    %71 = vector.broadcast %cst : f32 to vector<1x32xf32>
    %72 = arith.mulf %68, %71 : vector<1x32xf32>
    %73 = vector.extract_strided_slice %13 {offsets = [0, 128], sizes = [1, 32], strides = [1, 1]} : vector<1x512xf32> to vector<1x32xf32>
    %74 = vector.extract_strided_slice %14 {offsets = [0, 128], sizes = [1, 32], strides = [1, 1]} : vector<1x512xf32> to vector<1x32xf32>
    %75 = vector.extract_strided_slice %13 {offsets = [0, 160], sizes = [1, 32], strides = [1, 1]} : vector<1x512xf32> to vector<1x32xf32>
    %76 = arith.addf %73, %75 : vector<1x32xf32>
    %77 = vector.extract_strided_slice %14 {offsets = [0, 160], sizes = [1, 32], strides = [1, 1]} : vector<1x512xf32> to vector<1x32xf32>
    %78 = arith.maximumf %74, %77 : vector<1x32xf32>
    %79 = vector.extract_strided_slice %13 {offsets = [0, 192], sizes = [1, 32], strides = [1, 1]} : vector<1x512xf32> to vector<1x32xf32>
    %80 = arith.addf %76, %79 : vector<1x32xf32>
    %81 = vector.extract_strided_slice %14 {offsets = [0, 192], sizes = [1, 32], strides = [1, 1]} : vector<1x512xf32> to vector<1x32xf32>
    %82 = arith.maximumf %78, %81 : vector<1x32xf32>
    %83 = vector.extract_strided_slice %13 {offsets = [0, 224], sizes = [1, 32], strides = [1, 1]} : vector<1x512xf32> to vector<1x32xf32>
    %84 = arith.addf %80, %83 : vector<1x32xf32>
    %85 = vector.extract_strided_slice %14 {offsets = [0, 224], sizes = [1, 32], strides = [1, 1]} : vector<1x512xf32> to vector<1x32xf32>
    %86 = arith.maximumf %82, %85 : vector<1x32xf32>
    %cst_2 = arith.constant 6.250000e-02 : f32
    %87 = vector.broadcast %cst_2 : f32 to vector<1x32xf32>
    %88 = arith.mulf %84, %87 : vector<1x32xf32>
    %89 = vector.extract_strided_slice %13 {offsets = [0, 256], sizes = [1, 32], strides = [1, 1]} : vector<1x512xf32> to vector<1x32xf32>
    %90 = vector.extract_strided_slice %14 {offsets = [0, 256], sizes = [1, 32], strides = [1, 1]} : vector<1x512xf32> to vector<1x32xf32>
    %91 = vector.extract_strided_slice %13 {offsets = [0, 288], sizes = [1, 32], strides = [1, 1]} : vector<1x512xf32> to vector<1x32xf32>
    %92 = arith.addf %89, %91 : vector<1x32xf32>
    %93 = vector.extract_strided_slice %14 {offsets = [0, 288], sizes = [1, 32], strides = [1, 1]} : vector<1x512xf32> to vector<1x32xf32>
    %94 = arith.maximumf %90, %93 : vector<1x32xf32>
    %95 = vector.extract_strided_slice %13 {offsets = [0, 320], sizes = [1, 32], strides = [1, 1]} : vector<1x512xf32> to vector<1x32xf32>
    %96 = arith.addf %92, %95 : vector<1x32xf32>
    %97 = vector.extract_strided_slice %14 {offsets = [0, 320], sizes = [1, 32], strides = [1, 1]} : vector<1x512xf32> to vector<1x32xf32>
    %98 = arith.maximumf %94, %97 : vector<1x32xf32>
    %99 = vector.extract_strided_slice %13 {offsets = [0, 352], sizes = [1, 32], strides = [1, 1]} : vector<1x512xf32> to vector<1x32xf32>
    %100 = arith.addf %96, %99 : vector<1x32xf32>
    %101 = vector.extract_strided_slice %14 {offsets = [0, 352], sizes = [1, 32], strides = [1, 1]} : vector<1x512xf32> to vector<1x32xf32>
    %102 = arith.maximumf %98, %101 : vector<1x32xf32>
    %cst_3 = arith.constant 6.250000e-02 : f32
    %103 = vector.broadcast %cst_3 : f32 to vector<1x32xf32>
    %104 = arith.mulf %100, %103 : vector<1x32xf32>
    %105 = vector.extract_strided_slice %13 {offsets = [0, 384], sizes = [1, 32], strides = [1, 1]} : vector<1x512xf32> to vector<1x32xf32>
    %106 = vector.extract_strided_slice %14 {offsets = [0, 384], sizes = [1, 32], strides = [1, 1]} : vector<1x512xf32> to vector<1x32xf32>
    %107 = vector.extract_strided_slice %13 {offsets = [0, 416], sizes = [1, 32], strides = [1, 1]} : vector<1x512xf32> to vector<1x32xf32>
    %108 = arith.addf %105, %107 : vector<1x32xf32>
    %109 = vector.extract_strided_slice %14 {offsets = [0, 416], sizes = [1, 32], strides = [1, 1]} : vector<1x512xf32> to vector<1x32xf32>
    %110 = arith.maximumf %106, %109 : vector<1x32xf32>
    %111 = vector.extract_strided_slice %13 {offsets = [0, 448], sizes = [1, 32], strides = [1, 1]} : vector<1x512xf32> to vector<1x32xf32>
    %112 = arith.addf %108, %111 : vector<1x32xf32>
    %113 = vector.extract_strided_slice %14 {offsets = [0, 448], sizes = [1, 32], strides = [1, 1]} : vector<1x512xf32> to vector<1x32xf32>
    %114 = arith.maximumf %110, %113 : vector<1x32xf32>
    %115 = vector.extract_strided_slice %13 {offsets = [0, 480], sizes = [1, 32], strides = [1, 1]} : vector<1x512xf32> to vector<1x32xf32>
    %116 = arith.addf %112, %115 : vector<1x32xf32>
    %117 = vector.extract_strided_slice %14 {offsets = [0, 480], sizes = [1, 32], strides = [1, 1]} : vector<1x512xf32> to vector<1x32xf32>
    %118 = arith.maximumf %114, %117 : vector<1x32xf32>
    %cst_4 = arith.constant 6.250000e-02 : f32
    %119 = vector.broadcast %cst_4 : f32 to vector<1x32xf32>
    %120 = arith.mulf %116, %119 : vector<1x32xf32>
    %121 = vector.extract_strided_slice %27 {offsets = [0, 0], sizes = [1, 32], strides = [1, 1]} : vector<1x512xf32> to vector<1x32xf32>
    %122 = vector.extract_strided_slice %28 {offsets = [0, 0], sizes = [1, 32], strides = [1, 1]} : vector<1x512xf32> to vector<1x32xf32>
    %123 = vector.extract_strided_slice %27 {offsets = [0, 32], sizes = [1, 32], strides = [1, 1]} : vector<1x512xf32> to vector<1x32xf32>
    %124 = arith.addf %121, %123 : vector<1x32xf32>
    %125 = vector.extract_strided_slice %28 {offsets = [0, 32], sizes = [1, 32], strides = [1, 1]} : vector<1x512xf32> to vector<1x32xf32>
    %126 = arith.maximumf %122, %125 : vector<1x32xf32>
    %127 = vector.extract_strided_slice %27 {offsets = [0, 64], sizes = [1, 32], strides = [1, 1]} : vector<1x512xf32> to vector<1x32xf32>
    %128 = arith.addf %124, %127 : vector<1x32xf32>
    %129 = vector.extract_strided_slice %28 {offsets = [0, 64], sizes = [1, 32], strides = [1, 1]} : vector<1x512xf32> to vector<1x32xf32>
    %130 = arith.maximumf %126, %129 : vector<1x32xf32>
    %131 = vector.extract_strided_slice %27 {offsets = [0, 96], sizes = [1, 32], strides = [1, 1]} : vector<1x512xf32> to vector<1x32xf32>
    %132 = arith.addf %128, %131 : vector<1x32xf32>
    %133 = vector.extract_strided_slice %28 {offsets = [0, 96], sizes = [1, 32], strides = [1, 1]} : vector<1x512xf32> to vector<1x32xf32>
    %134 = arith.maximumf %130, %133 : vector<1x32xf32>
    %cst_5 = arith.constant 6.250000e-02 : f32
    %135 = vector.broadcast %cst_5 : f32 to vector<1x32xf32>
    %136 = arith.mulf %132, %135 : vector<1x32xf32>
    %137 = vector.extract_strided_slice %27 {offsets = [0, 128], sizes = [1, 32], strides = [1, 1]} : vector<1x512xf32> to vector<1x32xf32>
    %138 = vector.extract_strided_slice %28 {offsets = [0, 128], sizes = [1, 32], strides = [1, 1]} : vector<1x512xf32> to vector<1x32xf32>
    %139 = vector.extract_strided_slice %27 {offsets = [0, 160], sizes = [1, 32], strides = [1, 1]} : vector<1x512xf32> to vector<1x32xf32>
    %140 = arith.addf %137, %139 : vector<1x32xf32>
    %141 = vector.extract_strided_slice %28 {offsets = [0, 160], sizes = [1, 32], strides = [1, 1]} : vector<1x512xf32> to vector<1x32xf32>
    %142 = arith.maximumf %138, %141 : vector<1x32xf32>
    %143 = vector.extract_strided_slice %27 {offsets = [0, 192], sizes = [1, 32], strides = [1, 1]} : vector<1x512xf32> to vector<1x32xf32>
    %144 = arith.addf %140, %143 : vector<1x32xf32>
    %145 = vector.extract_strided_slice %28 {offsets = [0, 192], sizes = [1, 32], strides = [1, 1]} : vector<1x512xf32> to vector<1x32xf32>
    %146 = arith.maximumf %142, %145 : vector<1x32xf32>
    %147 = vector.extract_strided_slice %27 {offsets = [0, 224], sizes = [1, 32], strides = [1, 1]} : vector<1x512xf32> to vector<1x32xf32>
    %148 = arith.addf %144, %147 : vector<1x32xf32>
    %149 = vector.extract_strided_slice %28 {offsets = [0, 224], sizes = [1, 32], strides = [1, 1]} : vector<1x512xf32> to vector<1x32xf32>
    %150 = arith.maximumf %146, %149 : vector<1x32xf32>
    %cst_6 = arith.constant 6.250000e-02 : f32
    %151 = vector.broadcast %cst_6 : f32 to vector<1x32xf32>
    %152 = arith.mulf %148, %151 : vector<1x32xf32>
    %153 = vector.extract_strided_slice %27 {offsets = [0, 256], sizes = [1, 32], strides = [1, 1]} : vector<1x512xf32> to vector<1x32xf32>
    %154 = vector.extract_strided_slice %28 {offsets = [0, 256], sizes = [1, 32], strides = [1, 1]} : vector<1x512xf32> to vector<1x32xf32>
    %155 = vector.extract_strided_slice %27 {offsets = [0, 288], sizes = [1, 32], strides = [1, 1]} : vector<1x512xf32> to vector<1x32xf32>
    %156 = arith.addf %153, %155 : vector<1x32xf32>
    %157 = vector.extract_strided_slice %28 {offsets = [0, 288], sizes = [1, 32], strides = [1, 1]} : vector<1x512xf32> to vector<1x32xf32>
    %158 = arith.maximumf %154, %157 : vector<1x32xf32>
    %159 = vector.extract_strided_slice %27 {offsets = [0, 320], sizes = [1, 32], strides = [1, 1]} : vector<1x512xf32> to vector<1x32xf32>
    %160 = arith.addf %156, %159 : vector<1x32xf32>
    %161 = vector.extract_strided_slice %28 {offsets = [0, 320], sizes = [1, 32], strides = [1, 1]} : vector<1x512xf32> to vector<1x32xf32>
    %162 = arith.maximumf %158, %161 : vector<1x32xf32>
    %163 = vector.extract_strided_slice %27 {offsets = [0, 352], sizes = [1, 32], strides = [1, 1]} : vector<1x512xf32> to vector<1x32xf32>
    %164 = arith.addf %160, %163 : vector<1x32xf32>
    %165 = vector.extract_strided_slice %28 {offsets = [0, 352], sizes = [1, 32], strides = [1, 1]} : vector<1x512xf32> to vector<1x32xf32>
    %166 = arith.maximumf %162, %165 : vector<1x32xf32>
    %cst_7 = arith.constant 6.250000e-02 : f32
    %167 = vector.broadcast %cst_7 : f32 to vector<1x32xf32>
    %168 = arith.mulf %164, %167 : vector<1x32xf32>
    %169 = vector.extract_strided_slice %27 {offsets = [0, 384], sizes = [1, 32], strides = [1, 1]} : vector<1x512xf32> to vector<1x32xf32>
    %170 = vector.extract_strided_slice %28 {offsets = [0, 384], sizes = [1, 32], strides = [1, 1]} : vector<1x512xf32> to vector<1x32xf32>
    %171 = vector.extract_strided_slice %27 {offsets = [0, 416], sizes = [1, 32], strides = [1, 1]} : vector<1x512xf32> to vector<1x32xf32>
    %172 = arith.addf %169, %171 : vector<1x32xf32>
    %173 = vector.extract_strided_slice %28 {offsets = [0, 416], sizes = [1, 32], strides = [1, 1]} : vector<1x512xf32> to vector<1x32xf32>
    %174 = arith.maximumf %170, %173 : vector<1x32xf32>
    %175 = vector.extract_strided_slice %27 {offsets = [0, 448], sizes = [1, 32], strides = [1, 1]} : vector<1x512xf32> to vector<1x32xf32>
    %176 = arith.addf %172, %175 : vector<1x32xf32>
    %177 = vector.extract_strided_slice %28 {offsets = [0, 448], sizes = [1, 32], strides = [1, 1]} : vector<1x512xf32> to vector<1x32xf32>
    %178 = arith.maximumf %174, %177 : vector<1x32xf32>
    %179 = vector.extract_strided_slice %27 {offsets = [0, 480], sizes = [1, 32], strides = [1, 1]} : vector<1x512xf32> to vector<1x32xf32>
    %180 = arith.addf %176, %179 : vector<1x32xf32>
    %181 = vector.extract_strided_slice %28 {offsets = [0, 480], sizes = [1, 32], strides = [1, 1]} : vector<1x512xf32> to vector<1x32xf32>
    %182 = arith.maximumf %178, %181 : vector<1x32xf32>
    %cst_8 = arith.constant 6.250000e-02 : f32
    %183 = vector.broadcast %cst_8 : f32 to vector<1x32xf32>
    %184 = arith.mulf %180, %183 : vector<1x32xf32>
    %185 = vector.extract_strided_slice %41 {offsets = [0, 0], sizes = [1, 32], strides = [1, 1]} : vector<1x512xf32> to vector<1x32xf32>
    %186 = vector.extract_strided_slice %42 {offsets = [0, 0], sizes = [1, 32], strides = [1, 1]} : vector<1x512xf32> to vector<1x32xf32>
    %187 = vector.extract_strided_slice %41 {offsets = [0, 32], sizes = [1, 32], strides = [1, 1]} : vector<1x512xf32> to vector<1x32xf32>
    %188 = arith.addf %185, %187 : vector<1x32xf32>
    %189 = vector.extract_strided_slice %42 {offsets = [0, 32], sizes = [1, 32], strides = [1, 1]} : vector<1x512xf32> to vector<1x32xf32>
    %190 = arith.maximumf %186, %189 : vector<1x32xf32>
    %191 = vector.extract_strided_slice %41 {offsets = [0, 64], sizes = [1, 32], strides = [1, 1]} : vector<1x512xf32> to vector<1x32xf32>
    %192 = arith.addf %188, %191 : vector<1x32xf32>
    %193 = vector.extract_strided_slice %42 {offsets = [0, 64], sizes = [1, 32], strides = [1, 1]} : vector<1x512xf32> to vector<1x32xf32>
    %194 = arith.maximumf %190, %193 : vector<1x32xf32>
    %195 = vector.extract_strided_slice %41 {offsets = [0, 96], sizes = [1, 32], strides = [1, 1]} : vector<1x512xf32> to vector<1x32xf32>
    %196 = arith.addf %192, %195 : vector<1x32xf32>
    %197 = vector.extract_strided_slice %42 {offsets = [0, 96], sizes = [1, 32], strides = [1, 1]} : vector<1x512xf32> to vector<1x32xf32>
    %198 = arith.maximumf %194, %197 : vector<1x32xf32>
    %cst_9 = arith.constant 6.250000e-02 : f32
    %199 = vector.broadcast %cst_9 : f32 to vector<1x32xf32>
    %200 = arith.mulf %196, %199 : vector<1x32xf32>
    %201 = vector.extract_strided_slice %41 {offsets = [0, 128], sizes = [1, 32], strides = [1, 1]} : vector<1x512xf32> to vector<1x32xf32>
    %202 = vector.extract_strided_slice %42 {offsets = [0, 128], sizes = [1, 32], strides = [1, 1]} : vector<1x512xf32> to vector<1x32xf32>
    %203 = vector.extract_strided_slice %41 {offsets = [0, 160], sizes = [1, 32], strides = [1, 1]} : vector<1x512xf32> to vector<1x32xf32>
    %204 = arith.addf %201, %203 : vector<1x32xf32>
    %205 = vector.extract_strided_slice %42 {offsets = [0, 160], sizes = [1, 32], strides = [1, 1]} : vector<1x512xf32> to vector<1x32xf32>
    %206 = arith.maximumf %202, %205 : vector<1x32xf32>
    %207 = vector.extract_strided_slice %41 {offsets = [0, 192], sizes = [1, 32], strides = [1, 1]} : vector<1x512xf32> to vector<1x32xf32>
    %208 = arith.addf %204, %207 : vector<1x32xf32>
    %209 = vector.extract_strided_slice %42 {offsets = [0, 192], sizes = [1, 32], strides = [1, 1]} : vector<1x512xf32> to vector<1x32xf32>
    %210 = arith.maximumf %206, %209 : vector<1x32xf32>
    %211 = vector.extract_strided_slice %41 {offsets = [0, 224], sizes = [1, 32], strides = [1, 1]} : vector<1x512xf32> to vector<1x32xf32>
    %212 = arith.addf %208, %211 : vector<1x32xf32>
    %213 = vector.extract_strided_slice %42 {offsets = [0, 224], sizes = [1, 32], strides = [1, 1]} : vector<1x512xf32> to vector<1x32xf32>
    %214 = arith.maximumf %210, %213 : vector<1x32xf32>
    %cst_10 = arith.constant 6.250000e-02 : f32
    %215 = vector.broadcast %cst_10 : f32 to vector<1x32xf32>
    %216 = arith.mulf %212, %215 : vector<1x32xf32>
    %217 = vector.extract_strided_slice %41 {offsets = [0, 256], sizes = [1, 32], strides = [1, 1]} : vector<1x512xf32> to vector<1x32xf32>
    %218 = vector.extract_strided_slice %42 {offsets = [0, 256], sizes = [1, 32], strides = [1, 1]} : vector<1x512xf32> to vector<1x32xf32>
    %219 = vector.extract_strided_slice %41 {offsets = [0, 288], sizes = [1, 32], strides = [1, 1]} : vector<1x512xf32> to vector<1x32xf32>
    %220 = arith.addf %217, %219 : vector<1x32xf32>
    %221 = vector.extract_strided_slice %42 {offsets = [0, 288], sizes = [1, 32], strides = [1, 1]} : vector<1x512xf32> to vector<1x32xf32>
    %222 = arith.maximumf %218, %221 : vector<1x32xf32>
    %223 = vector.extract_strided_slice %41 {offsets = [0, 320], sizes = [1, 32], strides = [1, 1]} : vector<1x512xf32> to vector<1x32xf32>
    %224 = arith.addf %220, %223 : vector<1x32xf32>
    %225 = vector.extract_strided_slice %42 {offsets = [0, 320], sizes = [1, 32], strides = [1, 1]} : vector<1x512xf32> to vector<1x32xf32>
    %226 = arith.maximumf %222, %225 : vector<1x32xf32>
    %227 = vector.extract_strided_slice %41 {offsets = [0, 352], sizes = [1, 32], strides = [1, 1]} : vector<1x512xf32> to vector<1x32xf32>
    %228 = arith.addf %224, %227 : vector<1x32xf32>
    %229 = vector.extract_strided_slice %42 {offsets = [0, 352], sizes = [1, 32], strides = [1, 1]} : vector<1x512xf32> to vector<1x32xf32>
    %230 = arith.maximumf %226, %229 : vector<1x32xf32>
    %cst_11 = arith.constant 6.250000e-02 : f32
    %231 = vector.broadcast %cst_11 : f32 to vector<1x32xf32>
    %232 = arith.mulf %228, %231 : vector<1x32xf32>
    %233 = vector.extract_strided_slice %41 {offsets = [0, 384], sizes = [1, 32], strides = [1, 1]} : vector<1x512xf32> to vector<1x32xf32>
    %234 = vector.extract_strided_slice %42 {offsets = [0, 384], sizes = [1, 32], strides = [1, 1]} : vector<1x512xf32> to vector<1x32xf32>
    %235 = vector.extract_strided_slice %41 {offsets = [0, 416], sizes = [1, 32], strides = [1, 1]} : vector<1x512xf32> to vector<1x32xf32>
    %236 = arith.addf %233, %235 : vector<1x32xf32>
    %237 = vector.extract_strided_slice %42 {offsets = [0, 416], sizes = [1, 32], strides = [1, 1]} : vector<1x512xf32> to vector<1x32xf32>
    %238 = arith.maximumf %234, %237 : vector<1x32xf32>
    %239 = vector.extract_strided_slice %41 {offsets = [0, 448], sizes = [1, 32], strides = [1, 1]} : vector<1x512xf32> to vector<1x32xf32>
    %240 = arith.addf %236, %239 : vector<1x32xf32>
    %241 = vector.extract_strided_slice %42 {offsets = [0, 448], sizes = [1, 32], strides = [1, 1]} : vector<1x512xf32> to vector<1x32xf32>
    %242 = arith.maximumf %238, %241 : vector<1x32xf32>
    %243 = vector.extract_strided_slice %41 {offsets = [0, 480], sizes = [1, 32], strides = [1, 1]} : vector<1x512xf32> to vector<1x32xf32>
    %244 = arith.addf %240, %243 : vector<1x32xf32>
    %245 = vector.extract_strided_slice %42 {offsets = [0, 480], sizes = [1, 32], strides = [1, 1]} : vector<1x512xf32> to vector<1x32xf32>
    %246 = arith.maximumf %242, %245 : vector<1x32xf32>
    %cst_12 = arith.constant 6.250000e-02 : f32
    %247 = vector.broadcast %cst_12 : f32 to vector<1x32xf32>
    %248 = arith.mulf %244, %247 : vector<1x32xf32>
    %249 = vector.extract_strided_slice %55 {offsets = [0, 0], sizes = [1, 32], strides = [1, 1]} : vector<1x512xf32> to vector<1x32xf32>
    %250 = vector.extract_strided_slice %56 {offsets = [0, 0], sizes = [1, 32], strides = [1, 1]} : vector<1x512xf32> to vector<1x32xf32>
    %251 = vector.extract_strided_slice %55 {offsets = [0, 32], sizes = [1, 32], strides = [1, 1]} : vector<1x512xf32> to vector<1x32xf32>
    %252 = arith.addf %249, %251 : vector<1x32xf32>
    %253 = vector.extract_strided_slice %56 {offsets = [0, 32], sizes = [1, 32], strides = [1, 1]} : vector<1x512xf32> to vector<1x32xf32>
    %254 = arith.maximumf %250, %253 : vector<1x32xf32>
    %255 = vector.extract_strided_slice %55 {offsets = [0, 64], sizes = [1, 32], strides = [1, 1]} : vector<1x512xf32> to vector<1x32xf32>
    %256 = arith.addf %252, %255 : vector<1x32xf32>
    %257 = vector.extract_strided_slice %56 {offsets = [0, 64], sizes = [1, 32], strides = [1, 1]} : vector<1x512xf32> to vector<1x32xf32>
    %258 = arith.maximumf %254, %257 : vector<1x32xf32>
    %259 = vector.extract_strided_slice %55 {offsets = [0, 96], sizes = [1, 32], strides = [1, 1]} : vector<1x512xf32> to vector<1x32xf32>
    %260 = arith.addf %256, %259 : vector<1x32xf32>
    %261 = vector.extract_strided_slice %56 {offsets = [0, 96], sizes = [1, 32], strides = [1, 1]} : vector<1x512xf32> to vector<1x32xf32>
    %262 = arith.maximumf %258, %261 : vector<1x32xf32>
    %cst_13 = arith.constant 6.250000e-02 : f32
    %263 = vector.broadcast %cst_13 : f32 to vector<1x32xf32>
    %264 = arith.mulf %260, %263 : vector<1x32xf32>
    %265 = vector.extract_strided_slice %55 {offsets = [0, 128], sizes = [1, 32], strides = [1, 1]} : vector<1x512xf32> to vector<1x32xf32>
    %266 = vector.extract_strided_slice %56 {offsets = [0, 128], sizes = [1, 32], strides = [1, 1]} : vector<1x512xf32> to vector<1x32xf32>
    %267 = vector.extract_strided_slice %55 {offsets = [0, 160], sizes = [1, 32], strides = [1, 1]} : vector<1x512xf32> to vector<1x32xf32>
    %268 = arith.addf %265, %267 : vector<1x32xf32>
    %269 = vector.extract_strided_slice %56 {offsets = [0, 160], sizes = [1, 32], strides = [1, 1]} : vector<1x512xf32> to vector<1x32xf32>
    %270 = arith.maximumf %266, %269 : vector<1x32xf32>
    %271 = vector.extract_strided_slice %55 {offsets = [0, 192], sizes = [1, 32], strides = [1, 1]} : vector<1x512xf32> to vector<1x32xf32>
    %272 = arith.addf %268, %271 : vector<1x32xf32>
    %273 = vector.extract_strided_slice %56 {offsets = [0, 192], sizes = [1, 32], strides = [1, 1]} : vector<1x512xf32> to vector<1x32xf32>
    %274 = arith.maximumf %270, %273 : vector<1x32xf32>
    %275 = vector.extract_strided_slice %55 {offsets = [0, 224], sizes = [1, 32], strides = [1, 1]} : vector<1x512xf32> to vector<1x32xf32>
    %276 = arith.addf %272, %275 : vector<1x32xf32>
    %277 = vector.extract_strided_slice %56 {offsets = [0, 224], sizes = [1, 32], strides = [1, 1]} : vector<1x512xf32> to vector<1x32xf32>
    %278 = arith.maximumf %274, %277 : vector<1x32xf32>
    %cst_14 = arith.constant 6.250000e-02 : f32
    %279 = vector.broadcast %cst_14 : f32 to vector<1x32xf32>
    %280 = arith.mulf %276, %279 : vector<1x32xf32>
    %281 = vector.extract_strided_slice %55 {offsets = [0, 256], sizes = [1, 32], strides = [1, 1]} : vector<1x512xf32> to vector<1x32xf32>
    %282 = vector.extract_strided_slice %56 {offsets = [0, 256], sizes = [1, 32], strides = [1, 1]} : vector<1x512xf32> to vector<1x32xf32>
    %283 = vector.extract_strided_slice %55 {offsets = [0, 288], sizes = [1, 32], strides = [1, 1]} : vector<1x512xf32> to vector<1x32xf32>
    %284 = arith.addf %281, %283 : vector<1x32xf32>
    %285 = vector.extract_strided_slice %56 {offsets = [0, 288], sizes = [1, 32], strides = [1, 1]} : vector<1x512xf32> to vector<1x32xf32>
    %286 = arith.maximumf %282, %285 : vector<1x32xf32>
    %287 = vector.extract_strided_slice %55 {offsets = [0, 320], sizes = [1, 32], strides = [1, 1]} : vector<1x512xf32> to vector<1x32xf32>
    %288 = arith.addf %284, %287 : vector<1x32xf32>
    %289 = vector.extract_strided_slice %56 {offsets = [0, 320], sizes = [1, 32], strides = [1, 1]} : vector<1x512xf32> to vector<1x32xf32>
    %290 = arith.maximumf %286, %289 : vector<1x32xf32>
    %291 = vector.extract_strided_slice %55 {offsets = [0, 352], sizes = [1, 32], strides = [1, 1]} : vector<1x512xf32> to vector<1x32xf32>
    %292 = arith.addf %288, %291 : vector<1x32xf32>
    %293 = vector.extract_strided_slice %56 {offsets = [0, 352], sizes = [1, 32], strides = [1, 1]} : vector<1x512xf32> to vector<1x32xf32>
    %294 = arith.maximumf %290, %293 : vector<1x32xf32>
    %cst_15 = arith.constant 6.250000e-02 : f32
    %295 = vector.broadcast %cst_15 : f32 to vector<1x32xf32>
    %296 = arith.mulf %292, %295 : vector<1x32xf32>
    %297 = vector.extract_strided_slice %55 {offsets = [0, 384], sizes = [1, 32], strides = [1, 1]} : vector<1x512xf32> to vector<1x32xf32>
    %298 = vector.extract_strided_slice %56 {offsets = [0, 384], sizes = [1, 32], strides = [1, 1]} : vector<1x512xf32> to vector<1x32xf32>
    %299 = vector.extract_strided_slice %55 {offsets = [0, 416], sizes = [1, 32], strides = [1, 1]} : vector<1x512xf32> to vector<1x32xf32>
    %300 = arith.addf %297, %299 : vector<1x32xf32>
    %301 = vector.extract_strided_slice %56 {offsets = [0, 416], sizes = [1, 32], strides = [1, 1]} : vector<1x512xf32> to vector<1x32xf32>
    %302 = arith.maximumf %298, %301 : vector<1x32xf32>
    %303 = vector.extract_strided_slice %55 {offsets = [0, 448], sizes = [1, 32], strides = [1, 1]} : vector<1x512xf32> to vector<1x32xf32>
    %304 = arith.addf %300, %303 : vector<1x32xf32>
    %305 = vector.extract_strided_slice %56 {offsets = [0, 448], sizes = [1, 32], strides = [1, 1]} : vector<1x512xf32> to vector<1x32xf32>
    %306 = arith.maximumf %302, %305 : vector<1x32xf32>
    %307 = vector.extract_strided_slice %55 {offsets = [0, 480], sizes = [1, 32], strides = [1, 1]} : vector<1x512xf32> to vector<1x32xf32>
    %308 = arith.addf %304, %307 : vector<1x32xf32>
    %309 = vector.extract_strided_slice %56 {offsets = [0, 480], sizes = [1, 32], strides = [1, 1]} : vector<1x512xf32> to vector<1x32xf32>
    %310 = arith.maximumf %306, %309 : vector<1x32xf32>
    %cst_16 = arith.constant 6.250000e-02 : f32
    %311 = vector.broadcast %cst_16 : f32 to vector<1x32xf32>
    %312 = arith.mulf %308, %311 : vector<1x32xf32>
    %313 = arith.addf %72, %88 : vector<1x32xf32>
    %314 = arith.addf %313, %136 : vector<1x32xf32>
    %315 = arith.addf %314, %152 : vector<1x32xf32>
    %cst_17 = arith.constant 2.500000e-01 : f32
    %316 = vector.broadcast %cst_17 : f32 to vector<1x32xf32>
    %317 = arith.mulf %315, %316 : vector<1x32xf32>
    %318 = arith.addf %104, %120 : vector<1x32xf32>
    %319 = arith.addf %318, %168 : vector<1x32xf32>
    %320 = arith.addf %319, %184 : vector<1x32xf32>
    %cst_18 = arith.constant 2.500000e-01 : f32
    %321 = vector.broadcast %cst_18 : f32 to vector<1x32xf32>
    %322 = arith.mulf %320, %321 : vector<1x32xf32>
    %323 = arith.addf %200, %216 : vector<1x32xf32>
    %324 = arith.addf %323, %264 : vector<1x32xf32>
    %325 = arith.addf %324, %280 : vector<1x32xf32>
    %cst_19 = arith.constant 2.500000e-01 : f32
    %326 = vector.broadcast %cst_19 : f32 to vector<1x32xf32>
    %327 = arith.mulf %325, %326 : vector<1x32xf32>
    %328 = arith.addf %232, %248 : vector<1x32xf32>
    %329 = arith.addf %328, %296 : vector<1x32xf32>
    %330 = arith.addf %329, %312 : vector<1x32xf32>
    %cst_20 = arith.constant 2.500000e-01 : f32
    %331 = vector.broadcast %cst_20 : f32 to vector<1x32xf32>
    %332 = arith.mulf %330, %331 : vector<1x32xf32>
    %333 = arith.maximumf %70, %86 : vector<1x32xf32>
    %334 = arith.maximumf %134, %150 : vector<1x32xf32>
    %335 = arith.maximumf %333, %334 : vector<1x32xf32>
    %336 = arith.maximumf %102, %118 : vector<1x32xf32>
    %337 = arith.maximumf %166, %182 : vector<1x32xf32>
    %338 = arith.maximumf %336, %337 : vector<1x32xf32>
    %339 = arith.maximumf %198, %214 : vector<1x32xf32>
    %340 = arith.maximumf %262, %278 : vector<1x32xf32>
    %341 = arith.maximumf %339, %340 : vector<1x32xf32>
    %342 = arith.maximumf %230, %246 : vector<1x32xf32>
    %343 = arith.maximumf %294, %310 : vector<1x32xf32>
    %344 = arith.maximumf %342, %343 : vector<1x32xf32>
    %345 = arith.addf %317, %322 : vector<1x32xf32>
    %346 = arith.addf %345, %327 : vector<1x32xf32>
    %347 = arith.addf %346, %332 : vector<1x32xf32>
    %cst_21 = arith.constant 2.500000e-01 : f32
    %348 = vector.broadcast %cst_21 : f32 to vector<1x32xf32>
    %349 = arith.mulf %347, %348 : vector<1x32xf32>
    %350 = arith.maximumf %335, %338 : vector<1x32xf32>
    %351 = arith.maximumf %341, %344 : vector<1x32xf32>
    %352 = arith.maximumf %350, %351 : vector<1x32xf32>
    %353 = tpu.concatenate %349, %352, %317, %335, %322, %338, %327, %341, %332, %344, %72, %70, %88, %86, %104, %102 in 1 : vector<1x32xf32>, vector<1x32xf32>, vector<1x32xf32>, vector<1x32xf32>, vector<1x32xf32>, vector<1x32xf32>, vector<1x32xf32>, vector<1x32xf32>, vector<1x32xf32>, vector<1x32xf32>, vector<1x32xf32>, vector<1x32xf32>, vector<1x32xf32>, vector<1x32xf32>, vector<1x32xf32>, vector<1x32xf32> -> vector<1x512xf32>
    %354 = tpu.concatenate %120, %118, %136, %134, %152, %150, %168, %166, %184, %182, %200, %198, %216, %214, %232, %230 in 1 : vector<1x32xf32>, vector<1x32xf32>, vector<1x32xf32>, vector<1x32xf32>, vector<1x32xf32>, vector<1x32xf32>, vector<1x32xf32>, vector<1x32xf32>, vector<1x32xf32>, vector<1x32xf32>, vector<1x32xf32>, vector<1x32xf32>, vector<1x32xf32>, vector<1x32xf32>, vector<1x32xf32>, vector<1x32xf32> -> vector<1x512xf32>
    %355 = tpu.concatenate %248, %246, %264, %262, %280, %278, %296, %294, %312, %310 in 1 : vector<1x32xf32>, vector<1x32xf32>, vector<1x32xf32>, vector<1x32xf32>, vector<1x32xf32>, vector<1x32xf32>, vector<1x32xf32>, vector<1x32xf32>, vector<1x32xf32>, vector<1x32xf32> -> vector<1x320xf32>
    %356 = tpu.concatenate %353, %354, %355 in 1 : vector<1x512xf32>, vector<1x512xf32>, vector<1x320xf32> -> vector<1x1344xf32>
    %c0_22 = arith.constant 0 : index
    %c0_23 = arith.constant 0 : index
    %357 = vector.load %arg2[%c0_22, %c0_23] : memref<1344x12xf32, #tpu.memory_space<vmem>>, vector<1344x12xf32>
    %cst_24 = arith.constant dense<0.000000e+00> : vector<1x12xf32>
    %358 = tpu.matmul %356, %357, %cst_24 {dimension_numbers = #tpu.dot_dimension_numbers<[1], [0], [0], [1], [0, 0, 1, 1], [], []>} : vector<1x1344xf32>, vector<1344x12xf32>, vector<1x12xf32> -> vector<1x12xf32>
    %cst_25 = arith.constant 0.000000e+00 : f32
    %359 = vector.broadcast %cst_25 : f32 to vector<1x12xf32>
    %360 = arith.cmpf oge, %358, %359 : vector<1x12xf32>
    %cst_26 = arith.constant 0.00999999977 : f32
    %361 = vector.broadcast %cst_26 : f32 to vector<1x12xf32>
    %362 = arith.mulf %361, %358 : vector<1x12xf32>
    %363 = arith.select %360, %358, %362 : vector<1x12xi1>, vector<1x12xf32>
    %c0_27 = arith.constant 0 : index
    %c0_28 = arith.constant 0 : index
    %364 = vector.load %arg3[%c0_27, %c0_28] : memref<12x32xf32, #tpu.memory_space<vmem>>, vector<12x32xf32>
    %cst_29 = arith.constant dense<0.000000e+00> : vector<1x32xf32>
    %365 = tpu.matmul %363, %364, %cst_29 {dimension_numbers = #tpu.dot_dimension_numbers<[1], [0], [0], [1], [0, 0, 1, 1], [], []>} : vector<1x12xf32>, vector<12x32xf32>, vector<1x32xf32> -> vector<1x32xf32>
    %366 = math.tanh %365 : vector<1x32xf32>
    %cst_30 = arith.constant 1.000000e+00 : f32
    %367 = vector.broadcast %cst_30 : f32 to vector<1x32xf32>
    %368 = arith.addf %367, %366 : vector<1x32xf32>
    %369 = tpu.concatenate %368, %368, %368, %368, %368, %368, %368, %368, %368, %368, %368, %368, %368, %368, %368, %368 in 1 : vector<1x32xf32>, vector<1x32xf32>, vector<1x32xf32>, vector<1x32xf32>, vector<1x32xf32>, vector<1x32xf32>, vector<1x32xf32>, vector<1x32xf32>, vector<1x32xf32>, vector<1x32xf32>, vector<1x32xf32>, vector<1x32xf32>, vector<1x32xf32>, vector<1x32xf32>, vector<1x32xf32>, vector<1x32xf32> -> vector<1x512xf32>
    %370 = vector.shape_cast %369 : vector<1x512xf32> to vector<1x1x512xf32>
    %371 = vector.broadcast %370 : vector<1x1x512xf32> to vector<1x16x512xf32>
    %372 = arith.mulf %0, %371 : vector<1x16x512xf32>
    %c0_31 = arith.constant 0 : index
    %c0_32 = arith.constant 0 : index
    %c0_33 = arith.constant 0 : index
    %373 = vector.load %arg4[%c0_31, %c0_32, %c0_33] : memref<1x16x512xf32, #tpu.memory_space<vmem>>, vector<1x16x512xf32>
    tpu.vector_store %arg4[%c0_31, %c0_32, %c0_33], %372 {strides = array<i32>} : memref<1x16x512xf32, #tpu.memory_space<vmem>>, vector<1x16x512xf32>,
    return
  }
  func.func @transform_0(%arg0: i32) -> (i32, i32, i32) {
    %c0_i32 = arith.constant 0 : i32
    %c0_i32_0 = arith.constant 0 : i32
    %c0_i32_1 = arith.constant 0 : i32
    return %arg0, %c0_i32, %c0_i32_0 : i32, i32, i32
  }
  func.func @transform_1(%arg0: i32) -> (i32, i32) {
    %c0_i32 = arith.constant 0 : i32
    %c0_i32_0 = arith.constant 0 : i32
    %c0_i32_1 = arith.constant 0 : i32
    return %c0_i32, %c0_i32_0 : i32, i32
  }
  func.func @transform_2(%arg0: i32) -> (i32, i32) {
    %c0_i32 = arith.constant 0 : i32
    %c0_i32_0 = arith.constant 0 : i32
    %c0_i32_1 = arith.constant 0 : i32
    return %c0_i32, %c0_i32_0 : i32, i32
  }
  func.func @transform_3(%arg0: i32) -> (i32, i32, i32) {
    %c0_i32 = arith.constant 0 : i32
    %c0_i32_0 = arith.constant 0 : i32
    %c0_i32_1 = arith.constant 0 : i32
    return %arg0, %c0_i32, %c0_i32_0 : i32, i32, i32
  }
}

</mosaic_0001>

<llo_original>
// kernel: tpu_custom_call.1
$region0: #{tpu_custom_call.1}
  #allocation0 [shape = 'u32[]', space=smem, size = 0x4, offset = 0x4, fixed_abs, tag = 'smem constant byte address 0x4 - core index']
  #allocation1 [shape = 'u32[72,128]{1,0:T(1,128)}', space=vmem, size = 0x9000, scoped, tag = 'internal scratch']
  %s0 = inlined_call_operand.vmem [shape: f32[2,16,512], index: 0, kind: input, shape index: {}]
  %s1 = inlined_call_operand.vmem [shape: f32[1344,12], index: 1, kind: input, shape index: {}]
  %s2 = inlined_call_operand.vmem [shape: f32[12,32], index: 2, kind: input, shape index: {}]
  %s3 = inlined_call_operand.hbm [shape: f32[2,16,512], index: 3, kind: output, shape index: {}]
  %s4 = sld [smem:[#allocation0]]
  $region45: #{tpu_custom_call.1} parent=0
    _
  %s6 = ssub.s32 1, %s4
  %s7 = scalar_select 0, %s6, %s4
  $region1: #{tpu_custom_call.1} parent=0
    #allocation2 [shape = 'u8[65536]{0}', space=vmem, size = 0x10000, scoped, tag = 'output window, operand 0']
    #allocation3 [shape = 's32[2]{0}', space=sflag, size = 0x8, scoped, tag = 'scoped memory for tpu_custom_call.1']
    %8 = vsyncpa [#allocation3], 0
    %s9 = scalar_lea.sflag [#allocation3], 1
    %10 = vsyncpa %s9, 0
    loop: start=0, step=1, limit=4
    $region2: #{tpu_custom_call.1} parent=1 // loop_pre_header
      _
    $region3: #{tpu_custom_call.1} parent=1 // loop_header
      %s12 = sphi 0, %s16
      %p13 = scmp.ge.s32.totalorder %s12, 4
      %s22 = sphi 0, %s24
      %s25 = sphi 0, %s22
      %s26 = sphi 0, %s25
      %s42 = sphi 0, %s26
      %s46 = sphi 0, %s46
      %s48 = sphi 0, %s46
      %s49 = sphi 0, %s48
      %s63 = sphi 0, %s49
      %s67 = sphi 0, %s67
      %s69 = sphi 0, %s67
      %s70 = sphi 0, %s69
      %s84 = sphi 0, %s70
      %s90 = sphi 0, %s92
      %s93 = sphi 0, %s90
      %s94 = sphi 0, %s93
      %s110 = sphi 0, %s94
    $region4: #{tpu_custom_call.1} parent=1 // loop_header_branch
      %15 = sbr.rel (%p13) target = $region8
    $region5: #{tpu_custom_call.1} parent=1 // loop_body
      %s17 = ssub.s32 %s12, 1
      %s18 = ssub.s32 %s12, 2
      %s19 = sadd.s32 %s12, 1
      %s20 = ssub.s32 %s12, %s19
      %p21 = scmp.eq.s32.totalorder %s20, 0
      %s23 = sadd.s32 %s22, 1
      %s24 = scalar_select %p21, %s22, %s23
      %p27 = pneg %p21
      %p28 = scmp.eq.s32.totalorder %s12, 1
      %p29 = por %p27, %p28
      %p30 = scmp.ne.s32.totalorder %s22, %s25
      %p31 = scmp.eq.s32.totalorder %s12, 0
      %p32 = por %p30, %p31
      %p33 = scmp.ne.s32.totalorder %s22, %s25
      %p34 = scmp.eq.s32.totalorder %s17, 1
      %p35 = por %p33, %p34
      %p36 = scmp.ne.s32.totalorder %s25, %s26
      %p37 = scmp.eq.s32.totalorder %s17, 0
      %p38 = por %p36, %p37
      %p39 = scmp.ne.s32.totalorder %s25, %s26
      %p40 = scmp.eq.s32.totalorder %s18, 1
      %p41 = por %p39, %p40
      %p43 = scmp.ne.s32.totalorder %s26, %s42
      %p44 = scmp.eq.s32.totalorder %s18, 0
      %p45 = por %p43, %p44
      %s47 = sadd.s32 %s46, 1
      %p50 = scmp.eq.s32.totalorder %s12, 1
      %p51 = scmp.ne.s32.totalorder %s46, %s48
      %p52 = scmp.eq.s32.totalorder %s12, 0
      %p53 = por %p51, %p52
      %p54 = scmp.ne.s32.totalorder %s46, %s48
      %p55 = scmp.eq.s32.totalorder %s17, 1
      %p56 = por %p54, %p55
      %p57 = scmp.ne.s32.totalorder %s48, %s49
      %p58 = scmp.eq.s32.totalorder %s17, 0
      %p59 = por %p57, %p58
      %p60 = scmp.ne.s32.totalorder %s48, %s49
      %p61 = scmp.eq.s32.totalorder %s18, 1
      %p62 = por %p60, %p61
      %p64 = scmp.ne.s32.totalorder %s49, %s63
      %p65 = scmp.eq.s32.totalorder %s18, 0
      %p66 = por %p64, %p65
      %s68 = sadd.s32 %s67, 1
      %p71 = scmp.eq.s32.totalorder %s12, 1
      %p72 = scmp.ne.s32.totalorder %s67, %s69
      %p73 = scmp.eq.s32.totalorder %s12, 0
      %p74 = por %p72, %p73
      %p75 = scmp.ne.s32.totalorder %s67, %s69
      %p76 = scmp.eq.s32.totalorder %s17, 1
      %p77 = por %p75, %p76
      %p78 = scmp.ne.s32.totalorder %s69, %s70
      %p79 = scmp.eq.s32.totalorder %s17, 0
      %p80 = por %p78, %p79
      %p81 = scmp.ne.s32.totalorder %s69, %s70
      %p82 = scmp.eq.s32.totalorder %s18, 1
      %p83 = por %p81, %p82
      %p85 = scmp.ne.s32.totalorder %s70, %s84
      %p86 = scmp.eq.s32.totalorder %s18, 0
      %p87 = por %p85, %p86
      %s88 = ssub.s32 %s12, %s19
      %p89 = scmp.eq.s32.totalorder %s88, 0
      %s91 = sadd.s32 %s90, 1
      %s92 = scalar_select %p89, %s90, %s91
      %p95 = pneg %p89
      %p96 = scmp.eq.s32.totalorder %s12, 1
      %p97 = por %p95, %p96
      %p98 = scmp.ne.s32.totalorder %s90, %s93
      %p99 = scmp.eq.s32.totalorder %s12, 0
      %p100 = por %p98, %p99
      %p101 = scmp.ne.s32.totalorder %s90, %s93
      %p102 = scmp.eq.s32.totalorder %s17, 1
      %p103 = por %p101, %p102
      %p104 = scmp.ne.s32.totalorder %s93, %s94
      %p105 = scmp.eq.s32.totalorder %s17, 0
      %p106 = por %p104, %p105
      %p107 = scmp.ne.s32.totalorder %s93, %s94
      %p108 = scmp.eq.s32.totalorder %s18, 1
      %p109 = por %p107, %p108
      %p111 = scmp.ne.s32.totalorder %s94, %s110
      %p112 = scmp.eq.s32.totalorder %s18, 0
      %p113 = por %p111, %p112
      %p114 = scmp.le.s32.totalorder 1, %s12
      %p115 = scmp.lt.s32.totalorder %s12, 3
      %p116 = pnand %p114, %p115
      %p117 = pneg %p116
      // Predicated region
      $region9: #{tpu_custom_call.1} parent=5 // pred_check
        _
      $region10: #{tpu_custom_call.1} parent=5 // pred_check_branch
        %119 = sbr.rel (%p116) target = $region12
      $region11: #{tpu_custom_call.1} parent=5 // pred_region
        %s120 = ssub.s32 %s12, 1
        // Predicated region
        $region13: #{tpu_custom_call.1} parent=11 // pred_check
          %p121 = pneg %p59
        $region14: #{tpu_custom_call.1} parent=11 // pred_check_branch
          %123 = sbr.rel (%p121) target = $region16
        $region15: #{tpu_custom_call.1} parent=11 // pred_region
          _
        $region16: #{tpu_custom_call.1} parent=11 // pred_fallthru
          _
        // Predicated region
        $region17: #{tpu_custom_call.1} parent=11 // pred_check
          %p124 = pneg %p80
        $region18: #{tpu_custom_call.1} parent=11 // pred_check_branch
          %126 = sbr.rel (%p124) target = $region20
        $region19: #{tpu_custom_call.1} parent=11 // pred_region
          _
        $region20: #{tpu_custom_call.1} parent=11 // pred_fallthru
          _
      $region12: #{tpu_custom_call.1} parent=5 // pred_fallthru
        _
      %p127 = scmp.lt.s32.totalorder %s12, 2
      // Predicated region
      $region21: #{tpu_custom_call.1} parent=5 // pred_check
        %p128 = pneg %p127
      $region22: #{tpu_custom_call.1} parent=5 // pred_check_branch
        %130 = sbr.rel (%p128) target = $region24
      $region23: #{tpu_custom_call.1} parent=5 // pred_region
        // Predicated region
        $region25: #{tpu_custom_call.1} parent=23 // pred_check
          %p131 = pneg %p32
        $region26: #{tpu_custom_call.1} parent=23 // pred_check_branch
          %133 = sbr.rel (%p131) target = $region28
        $region27: #{tpu_custom_call.1} parent=23 // pred_region
          %p134 = scmp.lt.s32.totalorder %s12, 1
          %s135 = scalar_select %p134, %s12, 1
          %s136 = smul.addr %s135, 8
          %s137 = smul.addr %s136, 8
          %s138 = scalar_lea.vmem %s0, %s137
        $region28: #{tpu_custom_call.1} parent=23 // pred_fallthru
          _
      $region24: #{tpu_custom_call.1} parent=5 // pred_fallthru
        _
      %p139 = scmp.le.s32.totalorder 1, %s12
      %p140 = scmp.lt.s32.totalorder %s12, 3
      %p141 = pnand %p139, %p140
      %p142 = pneg %p141
      // Predicated region
      $region29: #{tpu_custom_call.1} parent=5 // pred_check
        _
      $region30: #{tpu_custom_call.1} parent=5 // pred_check_branch
        %144 = sbr.rel (%p141) target = $region32
      $region31: #{tpu_custom_call.1} parent=5 // pred_region
        %s145 = ssub.s32 %s12, 1
        %p146 = scmp.lt.s32.totalorder %s17, 1
        %s147 = scalar_select %p146, %s17, 1
        %s148 = smul.addr %s147, 8
        %s149 = smul.addr %s148, 8
        %s150 = scalar_lea.vmem %s0, %s149
        %p151 = pneg %p38
        %p152 = pneg %p35
        %p153 = pneg %p59
        %p154 = pneg %p56
        %p155 = pneg %p80
        %p156 = pneg %p77
        %p157 = pneg %p106
        %p158 = pneg %p103
        %s159 = sand.u32 %s93, 1
        %s160 = scalar_lea.sflag [#allocation3], %s159
        %s161 = sand.u32 %s93, 1
        %s162 = smul.addr %s161, 64
        %s163 = scalar_lea.vmem [#allocation2], %s162
        %p164 = scmp.lt.s32.totalorder %s17, 1
        %s165 = scalar_select %p164, %s17, 1
        %s166 = smul.addr %s165, 8
        %s167 = smul.addr %s166, 8
        %s168 = scalar_lea.vmem %s0, %s167
        %v169 = vld [vmem:[%s168] sm:$0xff]
        %v170 = vld [vmem:[%s168 + $0x8] sm:$0xff]
        %v171 = vld [vmem:[%s168 + $0x10] sm:$0xff]
        %v172 = vld [vmem:[%s168 + $0x18] sm:$0xff]
        %v173 = vld [vmem:[%s168 + $0x20] sm:$0xff]
        %v174 = vld [vmem:[%s168 + $0x28] sm:$0xff]
        %v175 = vld [vmem:[%s168 + $0x30] sm:$0xff]
        %v176 = vld [vmem:[%s168 + $0x38] sm:$0xff]
        %v181 = vrot.slane %v169, 1
        %v182 = vrot.slane %v170, 1
        %v183 = vrot.slane %v171, 1
        %v184 = vrot.slane %v172, 1
        %v189 = vadd.f32 %v169, %v181
        %v190 = vadd.f32 %v170, %v182
        %v191 = vadd.f32 %v171, %v183
        %v192 = vadd.f32 %v172, %v184
        %v193 = vmax.f32 %v169, %v181
        %v194 = vmax.f32 %v170, %v182
        %v195 = vmax.f32 %v171, %v183
        %v196 = vmax.f32 %v172, %v184
        %v197 = vrot.slane %v169, 2
        %v198 = vrot.slane %v170, 2
        %v199 = vrot.slane %v171, 2
        %v200 = vrot.slane %v172, 2
        %v205 = vadd.f32 %v189, %v197
        %v206 = vadd.f32 %v190, %v198
        %v207 = vadd.f32 %v191, %v199
        %v208 = vadd.f32 %v192, %v200
        %v209 = vmax.f32 %v193, %v197
        %v210 = vmax.f32 %v194, %v198
        %v211 = vmax.f32 %v195, %v199
        %v212 = vmax.f32 %v196, %v200
        %v213 = vrot.slane %v169, 3
        %v214 = vrot.slane %v170, 3
        %v215 = vrot.slane %v171, 3
        %v216 = vrot.slane %v172, 3
        %v221 = vadd.f32 %v205, %v213
        %v222 = vadd.f32 %v206, %v214
        %v223 = vadd.f32 %v207, %v215
        %v224 = vadd.f32 %v208, %v216
        %v225 = vmax.f32 %v209, %v213
        %v226 = vmax.f32 %v210, %v214
        %v227 = vmax.f32 %v211, %v215
        %v228 = vmax.f32 %v212, %v216
        %v233 = vrot.slane %v173, 1
        %v234 = vrot.slane %v174, 1
        %v235 = vrot.slane %v175, 1
        %v236 = vrot.slane %v176, 1
        %v241 = vadd.f32 %v173, %v233
        %v242 = vadd.f32 %v174, %v234
        %v243 = vadd.f32 %v175, %v235
        %v244 = vadd.f32 %v176, %v236
        %v245 = vmax.f32 %v173, %v233
        %v246 = vmax.f32 %v174, %v234
        %v247 = vmax.f32 %v175, %v235
        %v248 = vmax.f32 %v176, %v236
        %v249 = vrot.slane %v173, 2
        %v250 = vrot.slane %v174, 2
        %v251 = vrot.slane %v175, 2
        %v252 = vrot.slane %v176, 2
        %v257 = vadd.f32 %v241, %v249
        %v258 = vadd.f32 %v242, %v250
        %v259 = vadd.f32 %v243, %v251
        %v260 = vadd.f32 %v244, %v252
        %v261 = vmax.f32 %v245, %v249
        %v262 = vmax.f32 %v246, %v250
        %v263 = vmax.f32 %v247, %v251
        %v264 = vmax.f32 %v248, %v252
        %v265 = vrot.slane %v173, 3
        %v266 = vrot.slane %v174, 3
        %v267 = vrot.slane %v175, 3
        %v268 = vrot.slane %v176, 3
        %v273 = vadd.f32 %v257, %v265
        %v274 = vadd.f32 %v258, %v266
        %v275 = vadd.f32 %v259, %v267
        %v276 = vadd.f32 %v260, %v268
        %v277 = vmax.f32 %v261, %v265
        %v278 = vmax.f32 %v262, %v266
        %v279 = vmax.f32 %v263, %v267
        %v280 = vmax.f32 %v264, %v268
        %282 = vrot.lane.b32.xlu0 %v221, 96
        %v283 = vpop.permute.xlu0 %282
        %v285 = vadd.f32 %v221, %v283
        %287 = vrot.lane.b32.xlu0 %v225, 96
        %v288 = vpop.permute.xlu0 %287
        %v290 = vmax.f32 %v225, %v288
        %291 = vrot.lane.b32.xlu0 %v221, 64
        %v292 = vpop.permute.xlu0 %291
        %v294 = vadd.f32 %v285, %v292
        %295 = vrot.lane.b32.xlu0 %v225, 64
        %v296 = vpop.permute.xlu0 %295
        %v298 = vmax.f32 %v290, %v296
        %299 = vrot.lane.b32.xlu0 %v221, 32
        %v300 = vpop.permute.xlu0 %299
        %v302 = vadd.f32 %v294, %v300
        %303 = vrot.lane.b32.xlu0 %v225, 32
        %v304 = vpop.permute.xlu0 %303
        %v306 = vmax.f32 %v298, %v304
        %v307 = vmul.f32 %v302, 0.0625
        %309 = vrot.lane.b32.xlu0 %v222, 96
        %v310 = vpop.permute.xlu0 %309
        %v312 = vadd.f32 %v222, %v310
        %314 = vrot.lane.b32.xlu0 %v226, 96
        %v315 = vpop.permute.xlu0 %314
        %v317 = vmax.f32 %v226, %v315
        %318 = vrot.lane.b32.xlu0 %v222, 64
        %v319 = vpop.permute.xlu0 %318
        %v321 = vadd.f32 %v312, %v319
        %322 = vrot.lane.b32.xlu0 %v226, 64
        %v323 = vpop.permute.xlu0 %322
        %v325 = vmax.f32 %v317, %v323
        %326 = vrot.lane.b32.xlu0 %v222, 32
        %v327 = vpop.permute.xlu0 %326
        %v329 = vadd.f32 %v321, %v327
        %330 = vrot.lane.b32.xlu0 %v226, 32
        %v331 = vpop.permute.xlu0 %330
        %v333 = vmax.f32 %v325, %v331
        %v334 = vmul.f32 %v329, 0.0625
        %336 = vrot.lane.b32.xlu0 %v223, 96
        %v337 = vpop.permute.xlu0 %336
        %v339 = vadd.f32 %v223, %v337
        %341 = vrot.lane.b32.xlu0 %v227, 96
        %v342 = vpop.permute.xlu0 %341
        %v344 = vmax.f32 %v227, %v342
        %345 = vrot.lane.b32.xlu0 %v223, 64
        %v346 = vpop.permute.xlu0 %345
        %v348 = vadd.f32 %v339, %v346
        %349 = vrot.lane.b32.xlu0 %v227, 64
        %v350 = vpop.permute.xlu0 %349
        %v352 = vmax.f32 %v344, %v350
        %353 = vrot.lane.b32.xlu0 %v223, 32
        %v354 = vpop.permute.xlu0 %353
        %v356 = vadd.f32 %v348, %v354
        %357 = vrot.lane.b32.xlu0 %v227, 32
        %v358 = vpop.permute.xlu0 %357
        %v360 = vmax.f32 %v352, %v358
        %v361 = vmul.f32 %v356, 0.0625
        %363 = vrot.lane.b32.xlu0 %v224, 96
        %v364 = vpop.permute.xlu0 %363
        %v366 = vadd.f32 %v224, %v364
        %368 = vrot.lane.b32.xlu0 %v228, 96
        %v369 = vpop.permute.xlu0 %368
        %v371 = vmax.f32 %v228, %v369
        %372 = vrot.lane.b32.xlu0 %v224, 64
        %v373 = vpop.permute.xlu0 %372
        %v375 = vadd.f32 %v366, %v373
        %376 = vrot.lane.b32.xlu0 %v228, 64
        %v377 = vpop.permute.xlu0 %376
        %v379 = vmax.f32 %v371, %v377
        %380 = vrot.lane.b32.xlu0 %v224, 32
        %v381 = vpop.permute.xlu0 %380
        %v383 = vadd.f32 %v375, %v381
        %384 = vrot.lane.b32.xlu0 %v228, 32
        %v385 = vpop.permute.xlu0 %384
        %v387 = vmax.f32 %v379, %v385
        %v388 = vmul.f32 %v383, 0.0625
        %390 = vrot.lane.b32.xlu0 %v273, 96
        %v391 = vpop.permute.xlu0 %390
        %v393 = vadd.f32 %v273, %v391
        %395 = vrot.lane.b32.xlu0 %v277, 96
        %v396 = vpop.permute.xlu0 %395
        %v398 = vmax.f32 %v277, %v396
        %399 = vrot.lane.b32.xlu0 %v273, 64
        %v400 = vpop.permute.xlu0 %399
        %v402 = vadd.f32 %v393, %v400
        %403 = vrot.lane.b32.xlu0 %v277, 64
        %v404 = vpop.permute.xlu0 %403
        %v406 = vmax.f32 %v398, %v404
        %407 = vrot.lane.b32.xlu0 %v273, 32
        %v408 = vpop.permute.xlu0 %407
        %v410 = vadd.f32 %v402, %v408
        %411 = vrot.lane.b32.xlu0 %v277, 32
        %v412 = vpop.permute.xlu0 %411
        %v414 = vmax.f32 %v406, %v412
        %v415 = vmul.f32 %v410, 0.0625
        %417 = vrot.lane.b32.xlu0 %v274, 96
        %v418 = vpop.permute.xlu0 %417
        %v420 = vadd.f32 %v274, %v418
        %422 = vrot.lane.b32.xlu0 %v278, 96
        %v423 = vpop.permute.xlu0 %422
        %v425 = vmax.f32 %v278, %v423
        %426 = vrot.lane.b32.xlu0 %v274, 64
        %v427 = vpop.permute.xlu0 %426
        %v429 = vadd.f32 %v420, %v427
        %430 = vrot.lane.b32.xlu0 %v278, 64
        %v431 = vpop.permute.xlu0 %430
        %v433 = vmax.f32 %v425, %v431
        %434 = vrot.lane.b32.xlu0 %v274, 32
        %v435 = vpop.permute.xlu0 %434
        %v437 = vadd.f32 %v429, %v435
        %438 = vrot.lane.b32.xlu0 %v278, 32
        %v439 = vpop.permute.xlu0 %438
        %v441 = vmax.f32 %v433, %v439
        %v442 = vmul.f32 %v437, 0.0625
        %444 = vrot.lane.b32.xlu0 %v275, 96
        %v445 = vpop.permute.xlu0 %444
        %v447 = vadd.f32 %v275, %v445
        %449 = vrot.lane.b32.xlu0 %v279, 96
        %v450 = vpop.permute.xlu0 %449
        %v452 = vmax.f32 %v279, %v450
        %453 = vrot.lane.b32.xlu0 %v275, 64
        %v454 = vpop.permute.xlu0 %453
        %v456 = vadd.f32 %v447, %v454
        %457 = vrot.lane.b32.xlu0 %v279, 64
        %v458 = vpop.permute.xlu0 %457
        %v460 = vmax.f32 %v452, %v458
        %461 = vrot.lane.b32.xlu0 %v275, 32
        %v462 = vpop.permute.xlu0 %461
        %v464 = vadd.f32 %v456, %v462
        %465 = vrot.lane.b32.xlu0 %v279, 32
        %v466 = vpop.permute.xlu0 %465
        %v468 = vmax.f32 %v460, %v466
        %v469 = vmul.f32 %v464, 0.0625
        %471 = vrot.lane.b32.xlu0 %v276, 96
        %v472 = vpop.permute.xlu0 %471
        %v474 = vadd.f32 %v276, %v472
        %476 = vrot.lane.b32.xlu0 %v280, 96
        %v477 = vpop.permute.xlu0 %476
        %v479 = vmax.f32 %v280, %v477
        %480 = vrot.lane.b32.xlu0 %v276, 64
        %v481 = vpop.permute.xlu0 %480
        %v483 = vadd.f32 %v474, %v481
        %484 = vrot.lane.b32.xlu0 %v280, 64
        %v485 = vpop.permute.xlu0 %484
        %v487 = vmax.f32 %v479, %v485
        %488 = vrot.lane.b32.xlu0 %v276, 32
        %v489 = vpop.permute.xlu0 %488
        %v491 = vadd.f32 %v483, %v489
        %492 = vrot.lane.b32.xlu0 %v280, 32
        %v493 = vpop.permute.xlu0 %492
        %v495 = vmax.f32 %v487, %v493
        %v496 = vmul.f32 %v491, 0.0625
        %v497 = vadd.f32 %v307, %v334
        %v499 = vrot.slane %v307, 4
        %v501 = vadd.f32 %v497, %v499
        %v503 = vrot.slane %v334, 4
        %v505 = vadd.f32 %v501, %v503
        %v506 = vmul.f32 %v505, 0.25
        %v507 = vadd.f32 %v361, %v388
        %v509 = vrot.slane %v361, 4
        %v511 = vadd.f32 %v507, %v509
        %v513 = vrot.slane %v388, 4
        %v515 = vadd.f32 %v511, %v513
        %v516 = vmul.f32 %v515, 0.25
        %v517 = vadd.f32 %v415, %v442
        %v519 = vrot.slane %v415, 4
        %v521 = vadd.f32 %v517, %v519
        %v523 = vrot.slane %v442, 4
        %v525 = vadd.f32 %v521, %v523
        %v526 = vmul.f32 %v525, 0.25
        %v527 = vadd.f32 %v469, %v496
        %v529 = vrot.slane %v469, 4
        %v531 = vadd.f32 %v527, %v529
        %v533 = vrot.slane %v496, 4
        %v535 = vadd.f32 %v531, %v533
        %v536 = vmul.f32 %v535, 0.25
        %v537 = vmax.f32 %v306, %v333
        %v539 = vrot.slane %v537, 4
        %v541 = vmax.f32 %v537, %v539
        %v542 = vmax.f32 %v360, %v387
        %v544 = vrot.slane %v542, 4
        %v546 = vmax.f32 %v542, %v544
        %v547 = vmax.f32 %v414, %v441
        %v549 = vrot.slane %v547, 4
        %v551 = vmax.f32 %v547, %v549
        %v552 = vmax.f32 %v468, %v495
        %v554 = vrot.slane %v552, 4
        %v556 = vmax.f32 %v552, %v554
        %v557 = vadd.f32 %v506, %v516
        %v558 = vadd.f32 %v557, %v526
        %v559 = vadd.f32 %v558, %v536
        %v560 = vmul.f32 %v559, 0.25
        %v561 = vmax.f32 %v541, %v546
        %v562 = vmax.f32 %v551, %v556
        %v563 = vmax.f32 %v561, %v562
        %565 = vrot.lane.b32.xlu0 %v563, 32
        %v566 = vpop.permute.xlu0 %565
        %569 = vrot.lane.b32.xlu0 %v506, 64
        %v570 = vpop.permute.xlu0 %569
        %573 = vrot.lane.b32.xlu0 %v541, 96
        %v574 = vpop.permute.xlu0 %573
        %577 = vrot.lane.b32.xlu0 %v546, 32
        %v578 = vpop.permute.xlu0 %577
        %581 = vrot.lane.b32.xlu0 %v526, 64
        %v582 = vpop.permute.xlu0 %581
        %585 = vrot.lane.b32.xlu0 %v551, 96
        %v586 = vpop.permute.xlu0 %585
        %589 = vrot.lane.b32.xlu0 %v556, 32
        %v590 = vpop.permute.xlu0 %589
        %592 = vrot.lane.b32.xlu0 %v307, 64
        %v593 = vpop.permute.xlu0 %592
        %596 = vrot.lane.b32.xlu0 %v306, 96
        %v597 = vpop.permute.xlu0 %596
        %600 = vrot.lane.b32.xlu0 %v333, 32
        %v601 = vpop.permute.xlu0 %600
        %603 = vrot.lane.b32.xlu0 %v361, 64
        %v604 = vpop.permute.xlu0 %603
        %607 = vrot.lane.b32.xlu0 %v360, 96
        %v608 = vpop.permute.xlu0 %607
        %vm610 = vcmask 261120
        %v611 = vsel %vm610, %v560, %v566
        %vm612 = vcmask 523264
        %v613 = vsel %vm612, %v611, %v570
        %vm614 = vcmask 785408
        %v615 = vsel %vm614, %v613, %v574
        %v616 = vsel %vm610, %v516, %v578
        %v617 = vsel %vm612, %v616, %v582
        %v618 = vsel %vm614, %v617, %v586
        %v619 = vsel %vm610, %v536, %v590
        %v620 = vsel %vm612, %v619, %v593
        %v621 = vsel %vm614, %v620, %v597
        %v622 = vsel %vm610, %v334, %v601
        %v623 = vsel %vm612, %v622, %v604
        %v624 = vsel %vm614, %v623, %v608
        %626 = vrot.lane.b32.xlu0 %v387, 32
        %v627 = vpop.permute.xlu0 %626
        %629 = vrot.lane.b32.xlu0 %v499, 64
        %v630 = vpop.permute.xlu0 %629
        %v632 = vrot.slane %v306, 4
        %633 = vrot.lane.b32.xlu0 %v632, 96
        %v634 = vpop.permute.xlu0 %633
        %v636 = vrot.slane %v333, 4
        %637 = vrot.lane.b32.xlu0 %v636, 32
        %v638 = vpop.permute.xlu0 %637
        %640 = vrot.lane.b32.xlu0 %v509, 64
        %v641 = vpop.permute.xlu0 %640
        %v643 = vrot.slane %v360, 4
        %644 = vrot.lane.b32.xlu0 %v643, 96
        %v645 = vpop.permute.xlu0 %644
        %v647 = vrot.slane %v387, 4
        %648 = vrot.lane.b32.xlu0 %v647, 32
        %v649 = vpop.permute.xlu0 %648
        %651 = vrot.lane.b32.xlu0 %v415, 64
        %v652 = vpop.permute.xlu0 %651
        %655 = vrot.lane.b32.xlu0 %v414, 96
        %v656 = vpop.permute.xlu0 %655
        %659 = vrot.lane.b32.xlu0 %v441, 32
        %v660 = vpop.permute.xlu0 %659
        %662 = vrot.lane.b32.xlu0 %v469, 64
        %v663 = vpop.permute.xlu0 %662
        %666 = vrot.lane.b32.xlu0 %v468, 96
        %v667 = vpop.permute.xlu0 %666
        %v669 = vsel %vm610, %v388, %v627
        %v670 = vsel %vm612, %v669, %v630
        %v671 = vsel %vm614, %v670, %v634
        %v672 = vsel %vm610, %v503, %v638
        %v673 = vsel %vm612, %v672, %v641
        %v674 = vsel %vm614, %v673, %v645
        %v675 = vsel %vm610, %v513, %v649
        %v676 = vsel %vm612, %v675, %v652
        %v677 = vsel %vm614, %v676, %v656
        %v678 = vsel %vm610, %v442, %v660
        %v679 = vsel %vm612, %v678, %v663
        %v680 = vsel %vm614, %v679, %v667
        %682 = vrot.lane.b32.xlu0 %v495, 32
        %v683 = vpop.permute.xlu0 %682
        %685 = vrot.lane.b32.xlu0 %v519, 64
        %v686 = vpop.permute.xlu0 %685
        %v688 = vrot.slane %v414, 4
        %689 = vrot.lane.b32.xlu0 %v688, 96
        %v690 = vpop.permute.xlu0 %689
        %v692 = vrot.slane %v441, 4
        %693 = vrot.lane.b32.xlu0 %v692, 32
        %v694 = vpop.permute.xlu0 %693
        %696 = vrot.lane.b32.xlu0 %v529, 64
        %v697 = vpop.permute.xlu0 %696
        %v699 = vrot.slane %v468, 4
        %700 = vrot.lane.b32.xlu0 %v699, 96
        %v701 = vpop.permute.xlu0 %700
        %v703 = vrot.slane %v495, 4
        %704 = vrot.lane.b32.xlu0 %v703, 32
        %v705 = vpop.permute.xlu0 %704
        %v707 = vsel %vm610, %v496, %v683
        %v708 = vsel %vm612, %v707, %v686
        %v709 = vsel %vm614, %v708, %v690
        %v710 = vsel %vm610, %v523, %v694
        %v711 = vsel %vm612, %v710, %v697
        %v712 = vsel %vm614, %v711, %v701
        %v713 = vsel %vm610, %v533, %v705
        %v714 = vld [vmem:[%s1] sm:$0xff]
        %v715 = vld [vmem:[%s1 + $0x8] sm:$0xff]
        %v716 = vld [vmem:[%s1 + $0x10] sm:$0xff]
        %v717 = vld [vmem:[%s1 + $0x18] sm:$0xff]
        %v718 = vld [vmem:[%s1 + $0x20] sm:$0xff]
        %v719 = vld [vmem:[%s1 + $0x28] sm:$0xff]
        %v720 = vld [vmem:[%s1 + $0x30] sm:$0xff]
        %v721 = vld [vmem:[%s1 + $0x38] sm:$0xff]
        %v722 = vld [vmem:[%s1 + $0x40] sm:$0xff]
        %v723 = vld [vmem:[%s1 + $0x48] sm:$0xff]
        %v724 = vld [vmem:[%s1 + $0x50] sm:$0xff]
        %v725 = vld [vmem:[%s1 + $0x58] sm:$0xff]
        %v726 = vld [vmem:[%s1 + $0x60] sm:$0xff]
        %v727 = vld [vmem:[%s1 + $0x68] sm:$0xff]
        %v728 = vld [vmem:[%s1 + $0x70] sm:$0xff]
        %v729 = vld [vmem:[%s1 + $0x78] sm:$0xff]
        %v730 = vld [vmem:[%s1 + $0x80] sm:$0xff]
        %v731 = vld [vmem:[%s1 + $0x88] sm:$0xff]
        %v732 = vld [vmem:[%s1 + $0x90] sm:$0xff]
        %v733 = vld [vmem:[%s1 + $0x98] sm:$0xff]
        %v734 = vld [vmem:[%s1 + $0xa0] sm:$0xff]
        %v735 = vld [vmem:[%s1 + $0xa8] sm:$0xff]
        %v736 = vld [vmem:[%s1 + $0xb0] sm:$0xff]
        %v737 = vld [vmem:[%s1 + $0xb8] sm:$0xff]
        %v738 = vld [vmem:[%s1 + $0xc0] sm:$0xff]
        %v739 = vld [vmem:[%s1 + $0xc8] sm:$0xff]
        %v740 = vld [vmem:[%s1 + $0xd0] sm:$0xff]
        %v741 = vld [vmem:[%s1 + $0xd8] sm:$0xff]
        %v742 = vld [vmem:[%s1 + $0xe0] sm:$0xff]
        %v743 = vld [vmem:[%s1 + $0xe8] sm:$0xff]
        %v744 = vld [vmem:[%s1 + $0xf0] sm:$0xff]
        %v745 = vld [vmem:[%s1 + $0xf8] sm:$0xff]
        %v746 = vld [vmem:[%s1 + $0x100] sm:$0xff]
        %v747 = vld [vmem:[%s1 + $0x108] sm:$0xff]
        %v748 = vld [vmem:[%s1 + $0x110] sm:$0xff]
        %v749 = vld [vmem:[%s1 + $0x118] sm:$0xff]
        %v750 = vld [vmem:[%s1 + $0x120] sm:$0xff]
        %v751 = vld [vmem:[%s1 + $0x128] sm:$0xff]
        %v752 = vld [vmem:[%s1 + $0x130] sm:$0xff]
        %v753 = vld [vmem:[%s1 + $0x138] sm:$0xff]
        %v754 = vld [vmem:[%s1 + $0x140] sm:$0xff]
        %v755 = vld [vmem:[%s1 + $0x148] sm:$0xff]
        %v756 = vld [vmem:[%s1 + $0x150] sm:$0xff]
        %v757 = vld [vmem:[%s1 + $0x158] sm:$0xff]
        %v758 = vld [vmem:[%s1 + $0x160] sm:$0xff]
        %v759 = vld [vmem:[%s1 + $0x168] sm:$0xff]
        %v760 = vld [vmem:[%s1 + $0x170] sm:$0xff]
        %v761 = vld [vmem:[%s1 + $0x178] sm:$0xff]
        %v762 = vld [vmem:[%s1 + $0x180] sm:$0xff]
        %v763 = vld [vmem:[%s1 + $0x188] sm:$0xff]
        %v764 = vld [vmem:[%s1 + $0x190] sm:$0xff]
        %v765 = vld [vmem:[%s1 + $0x198] sm:$0xff]
        %v766 = vld [vmem:[%s1 + $0x1a0] sm:$0xff]
        %v767 = vld [vmem:[%s1 + $0x1a8] sm:$0xff]
        %v768 = vld [vmem:[%s1 + $0x1b0] sm:$0xff]
        %v769 = vld [vmem:[%s1 + $0x1b8] sm:$0xff]
        %v770 = vld [vmem:[%s1 + $0x1c0] sm:$0xff]
        %v771 = vld [vmem:[%s1 + $0x1c8] sm:$0xff]
        %v772 = vld [vmem:[%s1 + $0x1d0] sm:$0xff]
        %v773 = vld [vmem:[%s1 + $0x1d8] sm:$0xff]
        %v774 = vld [vmem:[%s1 + $0x1e0] sm:$0xff]
        %v775 = vld [vmem:[%s1 + $0x1e8] sm:$0xff]
        %v776 = vld [vmem:[%s1 + $0x1f0] sm:$0xff]
        %v777 = vld [vmem:[%s1 + $0x1f8] sm:$0xff]
        %v778 = vld [vmem:[%s1 + $0x200] sm:$0xff]
        %v779 = vld [vmem:[%s1 + $0x208] sm:$0xff]
        %v780 = vld [vmem:[%s1 + $0x210] sm:$0xff]
        %v781 = vld [vmem:[%s1 + $0x218] sm:$0xff]
        %v782 = vld [vmem:[%s1 + $0x220] sm:$0xff]
        %v783 = vld [vmem:[%s1 + $0x228] sm:$0xff]
        %v784 = vld [vmem:[%s1 + $0x230] sm:$0xff]
        %v785 = vld [vmem:[%s1 + $0x238] sm:$0xff]
        %v786 = vld [vmem:[%s1 + $0x240] sm:$0xff]
        %v787 = vld [vmem:[%s1 + $0x248] sm:$0xff]
        %v788 = vld [vmem:[%s1 + $0x250] sm:$0xff]
        %v789 = vld [vmem:[%s1 + $0x258] sm:$0xff]
        %v790 = vld [vmem:[%s1 + $0x260] sm:$0xff]
        %v791 = vld [vmem:[%s1 + $0x268] sm:$0xff]
        %v792 = vld [vmem:[%s1 + $0x270] sm:$0xff]
        %v793 = vld [vmem:[%s1 + $0x278] sm:$0xff]
        %v794 = vld [vmem:[%s1 + $0x280] sm:$0xff]
        %v795 = vld [vmem:[%s1 + $0x288] sm:$0xff]
        %v796 = vld [vmem:[%s1 + $0x290] sm:$0xff]
        %v797 = vld [vmem:[%s1 + $0x298] sm:$0xff]
        %v798 = vld [vmem:[%s1 + $0x2a0] sm:$0xff]
        %v799 = vld [vmem:[%s1 + $0x2a8] sm:$0xff]
        %v800 = vld [vmem:[%s1 + $0x2b0] sm:$0xff]
        %v801 = vld [vmem:[%s1 + $0x2b8] sm:$0xff]
        %v802 = vld [vmem:[%s1 + $0x2c0] sm:$0xff]
        %v803 = vld [vmem:[%s1 + $0x2c8] sm:$0xff]
        %v804 = vld [vmem:[%s1 + $0x2d0] sm:$0xff]
        %v805 = vld [vmem:[%s1 + $0x2d8] sm:$0xff]
        %v806 = vld [vmem:[%s1 + $0x2e0] sm:$0xff]
        %v807 = vld [vmem:[%s1 + $0x2e8] sm:$0xff]
        %v808 = vld [vmem:[%s1 + $0x2f0] sm:$0xff]
        %v809 = vld [vmem:[%s1 + $0x2f8] sm:$0xff]
        %v810 = vld [vmem:[%s1 + $0x300] sm:$0xff]
        %v811 = vld [vmem:[%s1 + $0x308] sm:$0xff]
        %v812 = vld [vmem:[%s1 + $0x310] sm:$0xff]
        %v813 = vld [vmem:[%s1 + $0x318] sm:$0xff]
        %v814 = vld [vmem:[%s1 + $0x320] sm:$0xff]
        %v815 = vld [vmem:[%s1 + $0x328] sm:$0xff]
        %v816 = vld [vmem:[%s1 + $0x330] sm:$0xff]
        %v817 = vld [vmem:[%s1 + $0x338] sm:$0xff]
        %v818 = vld [vmem:[%s1 + $0x340] sm:$0xff]
        %v819 = vld [vmem:[%s1 + $0x348] sm:$0xff]
        %v820 = vld [vmem:[%s1 + $0x350] sm:$0xff]
        %v821 = vld [vmem:[%s1 + $0x358] sm:$0xff]
        %v822 = vld [vmem:[%s1 + $0x360] sm:$0xff]
        %v823 = vld [vmem:[%s1 + $0x368] sm:$0xff]
        %v824 = vld [vmem:[%s1 + $0x370] sm:$0xff]
        %v825 = vld [vmem:[%s1 + $0x378] sm:$0xff]
        %v826 = vld [vmem:[%s1 + $0x380] sm:$0xff]
        %v827 = vld [vmem:[%s1 + $0x388] sm:$0xff]
        %v828 = vld [vmem:[%s1 + $0x390] sm:$0xff]
        %v829 = vld [vmem:[%s1 + $0x398] sm:$0xff]
        %v830 = vld [vmem:[%s1 + $0x3a0] sm:$0xff]
        %v831 = vld [vmem:[%s1 + $0x3a8] sm:$0xff]
        %v832 = vld [vmem:[%s1 + $0x3b0] sm:$0xff]
        %v833 = vld [vmem:[%s1 + $0x3b8] sm:$0xff]
        %v834 = vld [vmem:[%s1 + $0x3c0] sm:$0xff]
        %v835 = vld [vmem:[%s1 + $0x3c8] sm:$0xff]
        %v836 = vld [vmem:[%s1 + $0x3d0] sm:$0xff]
        %v837 = vld [vmem:[%s1 + $0x3d8] sm:$0xff]
        %v838 = vld [vmem:[%s1 + $0x3e0] sm:$0xff]
        %v839 = vld [vmem:[%s1 + $0x3e8] sm:$0xff]
        %v840 = vld [vmem:[%s1 + $0x3f0] sm:$0xff]
        %v841 = vld [vmem:[%s1 + $0x3f8] sm:$0xff]
        %v842 = vld [vmem:[%s1 + $0x400] sm:$0xff]
        %v843 = vld [vmem:[%s1 + $0x408] sm:$0xff]
        %v844 = vld [vmem:[%s1 + $0x410] sm:$0xff]
        %v845 = vld [vmem:[%s1 + $0x418] sm:$0xff]
        %v846 = vld [vmem:[%s1 + $0x420] sm:$0xff]
        %v847 = vld [vmem:[%s1 + $0x428] sm:$0xff]
        %v848 = vld [vmem:[%s1 + $0x430] sm:$0xff]
        %v849 = vld [vmem:[%s1 + $0x438] sm:$0xff]
        %v850 = vld [vmem:[%s1 + $0x440] sm:$0xff]
        %v851 = vld [vmem:[%s1 + $0x448] sm:$0xff]
        %v852 = vld [vmem:[%s1 + $0x450] sm:$0xff]
        %v853 = vld [vmem:[%s1 + $0x458] sm:$0xff]
        %v854 = vld [vmem:[%s1 + $0x460] sm:$0xff]
        %v855 = vld [vmem:[%s1 + $0x468] sm:$0xff]
        %v856 = vld [vmem:[%s1 + $0x470] sm:$0xff]
        %v857 = vld [vmem:[%s1 + $0x478] sm:$0xff]
        %v858 = vld [vmem:[%s1 + $0x480] sm:$0xff]
        %v859 = vld [vmem:[%s1 + $0x488] sm:$0xff]
        %v860 = vld [vmem:[%s1 + $0x490] sm:$0xff]
        %v861 = vld [vmem:[%s1 + $0x498] sm:$0xff]
        %v862 = vld [vmem:[%s1 + $0x4a0] sm:$0xff]
        %v863 = vld [vmem:[%s1 + $0x4a8] sm:$0xff]
        %v864 = vld [vmem:[%s1 + $0x4b0] sm:$0xff]
        %v865 = vld [vmem:[%s1 + $0x4b8] sm:$0xff]
        %v866 = vld [vmem:[%s1 + $0x4c0] sm:$0xff]
        %v867 = vld [vmem:[%s1 + $0x4c8] sm:$0xff]
        %v868 = vld [vmem:[%s1 + $0x4d0] sm:$0xff]
        %v869 = vld [vmem:[%s1 + $0x4d8] sm:$0xff]
        %v870 = vld [vmem:[%s1 + $0x4e0] sm:$0xff]
        %v871 = vld [vmem:[%s1 + $0x4e8] sm:$0xff]
        %v872 = vld [vmem:[%s1 + $0x4f0] sm:$0xff]
        %v873 = vld [vmem:[%s1 + $0x4f8] sm:$0xff]
        %v874 = vld [vmem:[%s1 + $0x500] sm:$0xff]
        %v875 = vld [vmem:[%s1 + $0x508] sm:$0xff]
        %v876 = vld [vmem:[%s1 + $0x510] sm:$0xff]
        %v877 = vld [vmem:[%s1 + $0x518] sm:$0xff]
        %v878 = vld [vmem:[%s1 + $0x520] sm:$0xff]
        %v879 = vld [vmem:[%s1 + $0x528] sm:$0xff]
        %v880 = vld [vmem:[%s1 + $0x530] sm:$0xff]
        %v881 = vld [vmem:[%s1 + $0x538] sm:$0xff]
        %v883 = vsel %vm612, %v713, 0
        %885 = vmatpush.msra.mxu0 %v729
        %886 = vmatpush.msra.mxu0 %v728
        %887 = vmatpush.msra.mxu0 %v727
        %888 = vmatpush.msra.mxu0 %v726
        %889 = vmatpush.msra.mxu0 %v725
        %890 = vmatpush.msra.mxu0 %v724
        %891 = vmatpush.msra.mxu0 %v723
        %892 = vmatpush.msra.mxu0 %v722
        %893 = vmatpush.msra.mxu0 %v721
        %894 = vmatpush.msra.mxu0 %v720
        %895 = vmatpush.msra.mxu0 %v719
        %896 = vmatpush.msra.mxu0 %v718
        %897 = vmatpush.msra.mxu0 %v717
        %898 = vmatpush.msra.mxu0 %v716
        %899 = vmatpush.msra.mxu0 %v715
        %900 = vmatpush.msra.mxu0 %v714
        %901 = vmatmul.f32.gmra.mxu0 %v615
        %v902 = vpop.f32.mrf.mxu0
        %v903 = vadd.f32 0.0, %v902
        %904 = vdwg.mxu0
        %905 = vmatpush.msra.mxu0 %v745
        %906 = vmatpush.msra.mxu0 %v744
        %907 = vmatpush.msra.mxu0 %v743
        %908 = vmatpush.msra.mxu0 %v742
        %909 = vmatpush.msra.mxu0 %v741
        %910 = vmatpush.msra.mxu0 %v740
        %911 = vmatpush.msra.mxu0 %v739
        %912 = vmatpush.msra.mxu0 %v738
        %913 = vmatpush.msra.mxu0 %v737
        %914 = vmatpush.msra.mxu0 %v736
        %915 = vmatpush.msra.mxu0 %v735
        %916 = vmatpush.msra.mxu0 %v734
        %917 = vmatpush.msra.mxu0 %v733
        %918 = vmatpush.msra.mxu0 %v732
        %919 = vmatpush.msra.mxu0 %v731
        %920 = vmatpush.msra.mxu0 %v730
        %921 = vmatmul.f32.gmra.mxu0 %v618
        %v922 = vpop.f32.mrf.mxu0
        %v923 = vadd.f32 %v903, %v922
        %924 = vdwg.mxu0
        %925 = vmatpush.msra.mxu0 %v761
        %926 = vmatpush.msra.mxu0 %v760
        %927 = vmatpush.msra.mxu0 %v759
        %928 = vmatpush.msra.mxu0 %v758
        %929 = vmatpush.msra.mxu0 %v757
        %930 = vmatpush.msra.mxu0 %v756
        %931 = vmatpush.msra.mxu0 %v755
        %932 = vmatpush.msra.mxu0 %v754
        %933 = vmatpush.msra.mxu0 %v753
        %934 = vmatpush.msra.mxu0 %v752
        %935 = vmatpush.msra.mxu0 %v751
        %936 = vmatpush.msra.mxu0 %v750
        %937 = vmatpush.msra.mxu0 %v749
        %938 = vmatpush.msra.mxu0 %v748
        %939 = vmatpush.msra.mxu0 %v747
        %940 = vmatpush.msra.mxu0 %v746
        %941 = vmatmul.f32.gmra.mxu0 %v621
        %v942 = vpop.f32.mrf.mxu0
        %v943 = vadd.f32 %v923, %v942
        %944 = vdwg.mxu0
        %945 = vmatpush.msra.mxu0 %v777
        %946 = vmatpush.msra.mxu0 %v776
        %947 = vmatpush.msra.mxu0 %v775
        %948 = vmatpush.msra.mxu0 %v774
        %949 = vmatpush.msra.mxu0 %v773
        %950 = vmatpush.msra.mxu0 %v772
        %951 = vmatpush.msra.mxu0 %v771
        %952 = vmatpush.msra.mxu0 %v770
        %953 = vmatpush.msra.mxu0 %v769
        %954 = vmatpush.msra.mxu0 %v768
        %955 = vmatpush.msra.mxu0 %v767
        %956 = vmatpush.msra.mxu0 %v766
        %957 = vmatpush.msra.mxu0 %v765
        %958 = vmatpush.msra.mxu0 %v764
        %959 = vmatpush.msra.mxu0 %v763
        %960 = vmatpush.msra.mxu0 %v762
        %961 = vmatmul.f32.gmra.mxu0 %v624
        %v962 = vpop.f32.mrf.mxu0
        %v963 = vadd.f32 %v943, %v962
        %964 = vdwg.mxu0
        %965 = vmatpush.msra.mxu0 %v793
        %966 = vmatpush.msra.mxu0 %v792
        %967 = vmatpush.msra.mxu0 %v791
        %968 = vmatpush.msra.mxu0 %v790
        %969 = vmatpush.msra.mxu0 %v789
        %970 = vmatpush.msra.mxu0 %v788
        %971 = vmatpush.msra.mxu0 %v787
        %972 = vmatpush.msra.mxu0 %v786
        %973 = vmatpush.msra.mxu0 %v785
        %974 = vmatpush.msra.mxu0 %v784
        %975 = vmatpush.msra.mxu0 %v783
        %976 = vmatpush.msra.mxu0 %v782
        %977 = vmatpush.msra.mxu0 %v781
        %978 = vmatpush.msra.mxu0 %v780
        %979 = vmatpush.msra.mxu0 %v779
        %980 = vmatpush.msra.mxu0 %v778
        %981 = vmatmul.f32.gmra.mxu0 %v671
        %v982 = vpop.f32.mrf.mxu0
        %v983 = vadd.f32 %v963, %v982
        %984 = vdwg.mxu0
        %985 = vmatpush.msra.mxu0 %v809
        %986 = vmatpush.msra.mxu0 %v808
        %987 = vmatpush.msra.mxu0 %v807
        %988 = vmatpush.msra.mxu0 %v806
        %989 = vmatpush.msra.mxu0 %v805
        %990 = vmatpush.msra.mxu0 %v804
        %991 = vmatpush.msra.mxu0 %v803
        %992 = vmatpush.msra.mxu0 %v802
        %993 = vmatpush.msra.mxu0 %v801
        %994 = vmatpush.msra.mxu0 %v800
        %995 = vmatpush.msra.mxu0 %v799
        %996 = vmatpush.msra.mxu0 %v798
        %997 = vmatpush.msra.mxu0 %v797
        %998 = vmatpush.msra.mxu0 %v796
        %999 = vmatpush.msra.mxu0 %v795
        %1000 = vmatpush.msra.mxu0 %v794
        %1001 = vmatmul.f32.gmra.mxu0 %v674
        %v1002 = vpop.f32.mrf.mxu0
        %v1003 = vadd.f32 %v983, %v1002
        %1004 = vdwg.mxu0
        %1005 = vmatpush.msra.mxu0 %v825
        %1006 = vmatpush.msra.mxu0 %v824
        %1007 = vmatpush.msra.mxu0 %v823
        %1008 = vmatpush.msra.mxu0 %v822
        %1009 = vmatpush.msra.mxu0 %v821
        %1010 = vmatpush.msra.mxu0 %v820
        %1011 = vmatpush.msra.mxu0 %v819
        %1012 = vmatpush.msra.mxu0 %v818
        %1013 = vmatpush.msra.mxu0 %v817
        %1014 = vmatpush.msra.mxu0 %v816
        %1015 = vmatpush.msra.mxu0 %v815
        %1016 = vmatpush.msra.mxu0 %v814
        %1017 = vmatpush.msra.mxu0 %v813
        %1018 = vmatpush.msra.mxu0 %v812
        %1019 = vmatpush.msra.mxu0 %v811
        %1020 = vmatpush.msra.mxu0 %v810
        %1021 = vmatmul.f32.gmra.mxu0 %v677
        %v1022 = vpop.f32.mrf.mxu0
        %v1023 = vadd.f32 %v1003, %v1022
        %1024 = vdwg.mxu0
        %1025 = vmatpush.msra.mxu0 %v841
        %1026 = vmatpush.msra.mxu0 %v840
        %1027 = vmatpush.msra.mxu0 %v839
        %1028 = vmatpush.msra.mxu0 %v838
        %1029 = vmatpush.msra.mxu0 %v837
        %1030 = vmatpush.msra.mxu0 %v836
        %1031 = vmatpush.msra.mxu0 %v835
        %1032 = vmatpush.msra.mxu0 %v834
        %1033 = vmatpush.msra.mxu0 %v833
        %1034 = vmatpush.msra.mxu0 %v832
        %1035 = vmatpush.msra.mxu0 %v831
        %1036 = vmatpush.msra.mxu0 %v830
        %1037 = vmatpush.msra.mxu0 %v829
        %1038 = vmatpush.msra.mxu0 %v828
        %1039 = vmatpush.msra.mxu0 %v827
        %1040 = vmatpush.msra.mxu0 %v826
        %1041 = vmatmul.f32.gmra.mxu0 %v680
        %v1042 = vpop.f32.mrf.mxu0
        %v1043 = vadd.f32 %v1023, %v1042
        %1044 = vdwg.mxu0
        %1045 = vmatpush.msra.mxu0 %v857
        %1046 = vmatpush.msra.mxu0 %v856
        %1047 = vmatpush.msra.mxu0 %v855
        %1048 = vmatpush.msra.mxu0 %v854
        %1049 = vmatpush.msra.mxu0 %v853
        %1050 = vmatpush.msra.mxu0 %v852
        %1051 = vmatpush.msra.mxu0 %v851
        %1052 = vmatpush.msra.mxu0 %v850
        %1053 = vmatpush.msra.mxu0 %v849
        %1054 = vmatpush.msra.mxu0 %v848
        %1055 = vmatpush.msra.mxu0 %v847
        %1056 = vmatpush.msra.mxu0 %v846
        %1057 = vmatpush.msra.mxu0 %v845
        %1058 = vmatpush.msra.mxu0 %v844
        %1059 = vmatpush.msra.mxu0 %v843
        %1060 = vmatpush.msra.mxu0 %v842
        %1061 = vmatmul.f32.gmra.mxu0 %v709
        %v1062 = vpop.f32.mrf.mxu0
        %v1063 = vadd.f32 %v1043, %v1062
        %1064 = vdwg.mxu0
        %1065 = vmatpush.msra.mxu0 %v873
        %1066 = vmatpush.msra.mxu0 %v872
        %1067 = vmatpush.msra.mxu0 %v871
        %1068 = vmatpush.msra.mxu0 %v870
        %1069 = vmatpush.msra.mxu0 %v869
        %1070 = vmatpush.msra.mxu0 %v868
        %1071 = vmatpush.msra.mxu0 %v867
        %1072 = vmatpush.msra.mxu0 %v866
        %1073 = vmatpush.msra.mxu0 %v865
        %1074 = vmatpush.msra.mxu0 %v864
        %1075 = vmatpush.msra.mxu0 %v863
        %1076 = vmatpush.msra.mxu0 %v862
        %1077 = vmatpush.msra.mxu0 %v861
        %1078 = vmatpush.msra.mxu0 %v860
        %1079 = vmatpush.msra.mxu0 %v859
        %1080 = vmatpush.msra.mxu0 %v858
        %1081 = vmatmul.f32.gmra.mxu0 %v712
        %v1082 = vpop.f32.mrf.mxu0
        %v1083 = vadd.f32 %v1063, %v1082
        %1084 = vdwg.mxu0
        %1085 = vmatpush.msra.mxu0 0.0
        %1086 = vmatpush.msra.mxu0 0.0
        %1087 = vmatpush.msra.mxu0 0.0
        %1088 = vmatpush.msra.mxu0 0.0
        %1089 = vmatpush.msra.mxu0 0.0
        %1090 = vmatpush.msra.mxu0 0.0
        %1091 = vmatpush.msra.mxu0 0.0
        %1092 = vmatpush.msra.mxu0 0.0
        %1093 = vmatpush.msra.mxu0 %v881
        %1094 = vmatpush.msra.mxu0 %v880
        %1095 = vmatpush.msra.mxu0 %v879
        %1096 = vmatpush.msra.mxu0 %v878
        %1097 = vmatpush.msra.mxu0 %v877
        %1098 = vmatpush.msra.mxu0 %v876
        %1099 = vmatpush.msra.mxu0 %v875
        %1100 = vmatpush.msra.mxu0 %v874
        %1101 = vmatmul.f32.gmra.mxu0 %v883
        %v1102 = vpop.f32.mrf.mxu0
        %v1103 = vadd.f32 %v1083, %v1102
        %1104 = vdwg.mxu0
        %vm1105 = vcmp.ge.f32.partialorder %v1103, 0.0
        %v1106 = vmul.f32 %v1103, 0.01
        %v1107 = vsel %vm1105, %v1103, %v1106
        %v1108 = vld [vmem:[%s2] sm:$0xff]
        %v1109 = vld [vmem:[%s2 + $0x8] sm:$0xf]
        %vm1110 = vcmask 97280
        %v1112 = vsel %vm1110, %v1107, 0
        %vm1114 = vcmask 1043456
        %v1116 = vsel %vm1114, %v1109, 0
        %1118 = vmatpush.msra.mxu0 0.0
        %1119 = vmatpush.msra.mxu0 0.0
        %1120 = vmatpush.msra.mxu0 0.0
        %1121 = vmatpush.msra.mxu0 0.0
        %1122 = vmatpush.msra.mxu0 0.0
        %1123 = vmatpush.msra.mxu0 0.0
        %1124 = vmatpush.msra.mxu0 0.0
        %1125 = vmatpush.msra.mxu0 0.0
        %1126 = vmatpush.msra.mxu0 0.0
        %1127 = vmatpush.msra.mxu0 0.0
        %1128 = vmatpush.msra.mxu0 0.0
        %1129 = vmatpush.msra.mxu0 0.0
        %1130 = vmatpush.msra.mxu0 0.0
        %1131 = vmatpush.msra.mxu0 0.0
        %1132 = vmatpush.msra.mxu0 %v1116
        %1133 = vmatpush.msra.mxu0 %v1108
        %1134 = vmatmul.f32.gmra.mxu0 %v1112
        %v1135 = vpop.f32.mrf.mxu0
        %v1136 = vadd.f32 0.0, %v1135
        %1137 = vdwg.mxu0
        %v1138 = vtanh.pop %v1136
        %v1139 = vadd.f32 %v1138, 1.0
        %1141 = vrot.lane.b32.xlu0 %v1139, 32
        %v1142 = vpop.permute.xlu0 %1141
        %1144 = vrot.lane.b32.xlu0 %v1139, 64
        %v1145 = vpop.permute.xlu0 %1144
        %1147 = vrot.lane.b32.xlu0 %v1139, 96
        %v1148 = vpop.permute.xlu0 %1147
        %v1150 = vsel %vm610, %v1139, %v1142
        %v1151 = vsel %vm612, %v1150, %v1145
        %v1152 = vsel %vm614, %v1151, %v1148
        %v1153 = vperm.slane %v1152, 0
        %v1154 = vmul.f32 %v169, %v1153
        %v1155 = vmul.f32 %v170, %v1153
        %v1156 = vmul.f32 %v171, %v1153
        %v1157 = vmul.f32 %v172, %v1153
        %v1158 = vmul.f32 %v173, %v1153
        %v1159 = vmul.f32 %v174, %v1153
        %v1160 = vmul.f32 %v175, %v1153
        %v1161 = vmul.f32 %v176, %v1153
        %1162 = vst [vmem:[%s163] sm:$0xff] %v1154
        %1163 = vst [vmem:[%s163 + $0x8] sm:$0xff] %v1155
        %1164 = vst [vmem:[%s163 + $0x10] sm:$0xff] %v1156
        %1165 = vst [vmem:[%s163 + $0x18] sm:$0xff] %v1157
        %1166 = vst [vmem:[%s163 + $0x20] sm:$0xff] %v1158
        %1167 = vst [vmem:[%s163 + $0x28] sm:$0xff] %v1159
        %1168 = vst [vmem:[%s163 + $0x30] sm:$0xff] %v1160
        %1169 = vst [vmem:[%s163 + $0x38] sm:$0xff] %v1161
        %s1170 = sand.u32 %s93, 1
        %s1171 = scalar_lea.sflag [#allocation3], %s1170
        %s1172 = sand.u32 %s93, 1
        %s1173 = smul.addr %s1172, 64
        %s1174 = scalar_lea.vmem [#allocation2], %s1173
        // Predicated region
        $region33: #{tpu_custom_call.1} parent=31 // pred_check
          %p1175 = pneg %p103
        $region34: #{tpu_custom_call.1} parent=31 // pred_check_branch
          %1177 = sbr.rel (%p1175) target = $region36
        $region35: #{tpu_custom_call.1} parent=31 // pred_region
          %1179 = vsyncadd %s1171, 0
          %s1180 = smul.addr %s17, 8
          %s1181 = smul.addr %s1180, 8
          %s1182 = scalar_lea.hbm %s3, %s1181
          %s1183 = sshll.u32 %s1174, 4
          %s1184 = int_to_ptr.vmem [resolvable:$true] %s1183
          %s1185 = sshll.u32 %s1182, 4
          %s1186 = int_to_ptr.hbm [resolvable:$true] %s1185
          %1191 = dma.vmem_to_hbm [thread:$0]  %s1184, 1024, %s1186, %s1171, 512, 512, 32
        $region36: #{tpu_custom_call.1} parent=31 // pred_fallthru
          _
      $region32: #{tpu_custom_call.1} parent=5 // pred_fallthru
        _
      %p1192 = scmp.le.s32.totalorder 2, %s12
      // Predicated region
      $region37: #{tpu_custom_call.1} parent=5 // pred_check
        %p1193 = pneg %p1192
      $region38: #{tpu_custom_call.1} parent=5 // pred_check_branch
        %1195 = sbr.rel (%p1193) target = $region40
      $region39: #{tpu_custom_call.1} parent=5 // pred_region
        %s1196 = ssub.s32 %s12, 2
        // Predicated region
        $region41: #{tpu_custom_call.1} parent=39 // pred_check
          %p1197 = pneg %p109
        $region42: #{tpu_custom_call.1} parent=39 // pred_check_branch
          %1199 = sbr.rel (%p1197) target = $region44
        $region43: #{tpu_custom_call.1} parent=39 // pred_region
          %s1200 = sand.u32 %s94, 1
          %s1201 = scalar_lea.sflag [#allocation3], %s1200
          %s1202 = sand.u32 %s94, 1
          %s1203 = smul.addr %s1202, 64
          %s1204 = scalar_lea.vmem [#allocation2], %s1203
          %1206 = dma.done %s1201, 1024
        $region44: #{tpu_custom_call.1} parent=39 // pred_fallthru
          _
      $region40: #{tpu_custom_call.1} parent=5 // pred_fallthru
        _
    $region6: #{tpu_custom_call.1} parent=1 // loop_footer
      %s16 = sadd.s32 1, %s12
    $region7: #{tpu_custom_call.1} parent=1 // loop_footer_branch
      %11 = sbr.rel target = $region3
    $region8: #{tpu_custom_call.1} parent=1 // loop_exit
      _
    %1207 = vsyncpa [#allocation3], 1
    %s1208 = scalar_lea.sflag [#allocation3], 1
    %1209 = vsyncpa %s1208, 1

</llo_original>
